<compile_context>
chip_gen: v5e
topology: v5e:2x2
jax: 0.10.0
libtpu: 0.0.40
codegen_flags: <defaults>
</compile_context>

<pallas_src>
import jax
import jax.numpy as jnp
import numpy as np
from jax.experimental import pallas as pl
from jax.experimental.pallas import tpu as pltpu


_UNROLL_T_MAX = 32  # fully unroll the time loop (static indices) up to this T


# ----------------------------------------------------------------------------
# Fused Pallas kernel: stacked LSTM + output projection MLP
# ----------------------------------------------------------------------------
def _make_fused_kernel(L, B, T, D, H, O, unrolled):
    # inputs: x_tm, h0, c0, wx0, wh0, b0, (wm, bm) * (L-1), w1, b1, w2, b2
    n_in = 6 + 2 * (L - 1) + 4

    def kernel(*args):
        x_ref, h0_ref, c0_ref, wx0_ref, wh0_ref, b0_ref = args[:6]
        upper = args[6:6 + 2 * (L - 1)]
        w1_ref, b1_ref, w2_ref, b2_ref = args[6 + 2 * (L - 1):n_in]
        out_ref, hN_ref, cN_ref = args[n_in:n_in + 3]
        if not unrolled:
            xg_scr, hseq_scr = args[n_in + 3:]

        mm_dtype = wh0_ref.dtype  # bf16 or f32 matmul operands

        # Hoist all recurrent weights into values once (resident in vregs/VMEM
        # across the whole recurrence).
        Wh0 = wh0_ref[...]                                       # (H, 4H)
        Wm = [upper[2 * i][...] for i in range(L - 1)]           # (2H, 4H)
        # Pre-broadcast biases for upper layers (hoisted out of the time loop).
        Bup = [jnp.broadcast_to(upper[2 * i + 1][...], (B, 4 * H))
               for i in range(L - 1)]

        # Per-lane gate affine, hoisted: i/f/o weight columns were pre-scaled
        # by 0.5 at prep time, so  tanh(gates) * scale + shift  yields
        # sigmoid(z) on i/f/o lanes and tanh(z) on g lanes with ONE EUP push.
        lane = jax.lax.broadcasted_iota(jnp.int32, (1, 4 * H), 1)
        is_g = (lane >= 2 * H) & (lane < 3 * H)
        gate_scale = jnp.broadcast_to(jnp.where(is_g, 1.0, 0.5), (B, 4 * H))
        gate_shift = 1.0 - gate_scale                            # 0.5 on i/f/o, 0 on g

        # Layer-0 input projection (incl. folded bias) for ALL timesteps in one
        # MXU call, kept as a value (x is time-major: row t*B+b).
        xg = (jnp.dot(x_ref[...].astype(mm_dtype), wx0_ref[...],
                      preferred_element_type=jnp.float32)
              + b0_ref[...])                                     # (T*B, 4H), f32

        def cell(gates_pre, c_prev):
            t_all = jnp.tanh(gates_pre)                          # one full-width EUP op
            g_all = t_all * gate_scale + gate_shift
            i = g_all[:, 0 * H:1 * H]
            f = g_all[:, 1 * H:2 * H]
            g = g_all[:, 2 * H:3 * H]
            o = g_all[:, 3 * H:4 * H]
            c = f * c_prev + i * g
            h = o * jnp.tanh(c)
            return h, c

        def step(hs, cs, xg_t):
            # Layer 0: x contribution precomputed -> single (B,H)x(H,4H) matmul.
            gates0 = xg_t + jnp.dot(hs[0].astype(mm_dtype), Wh0,
                                    preferred_element_type=jnp.float32)
            h, c = cell(gates0, cs[0])
            new_h, new_c = [h], [c]
            # Upper layers: ONE merged (B,2H)x(2H,4H) matmul each.
            for l in range(1, L):
                hin = jnp.concatenate([new_h[l - 1], hs[l]],
                                      axis=1).astype(mm_dtype)   # (B, 2H)
                gates = jnp.dot(hin, Wm[l - 1],
                                preferred_element_type=jnp.float32) + Bup[l - 1]
                h, c = cell(gates, cs[l])
                new_h.append(h)
                new_c.append(c)
            return tuple(new_h), tuple(new_c)

        h_state = tuple(h0_ref[l] for l in range(L))
        c_state = tuple(c0_ref[l] for l in range(L))

        if unrolled:
            # Small T: full unroll, static indices; h/c/xg stay in vregs and the
            # top-layer sequence is materialized ONCE after the loop.
            h_top = []
            for t in range(T):
                xg_t = xg[t * B:(t + 1) * B, :]                  # value slice
                h_state, c_state = step(h_state, c_state, xg_t)
                h_top.append(h_state[-1])
            hflat = jnp.concatenate(h_top, axis=0)               # (T*B, H)
        else:
            # Long T: bounded code size, time-major scratch so every step
            # touches a contiguous leading-dim (B, .) tile.
            xg_scr[...] = xg.reshape(T, B, 4 * H)

            def body(t, carry):
                hs, cs = carry
                xg_t = xg_scr[pl.ds(t, 1), :, :].reshape(B, 4 * H)
                hs, cs = step(hs, cs, xg_t)
                hseq_scr[pl.ds(t, 1), :, :] = hs[-1].reshape(1, B, H)
                return hs, cs

            h_state, c_state = jax.lax.fori_loop(
                0, T, body, (h_state, c_state), unroll=2)
            hflat = hseq_scr[...].reshape(T * B, H)

        # Final hidden / cell state: written exactly once.
        for l in range(L):
            hN_ref[l] = h_state[l]
            cN_ref[l] = c_state[l]

        # Output head over the full sequence in one shot:
        # Linear -> ReLU -> (Dropout = identity in eval) -> Linear -> Tanh.
        z = jnp.maximum(
            jnp.dot(hflat.astype(mm_dtype), w1_ref[...],
                    preferred_element_type=jnp.float32) + b1_ref[...], 0.0)
        y = jnp.tanh(
            jnp.dot(z.astype(mm_dtype), w2_ref[...],
                    preferred_element_type=jnp.float32) + b2_ref[...])
        out_ref[...] = y.astype(out_ref.dtype)                   # (T*B, O)

    return kernel


# ----------------------------------------------------------------------------
# Wrappers
# ----------------------------------------------------------------------------
def prepare_kernel_params(params, matmul_dtype=jnp.float32):
    """One-time weight prep: transpose to (in, out), fold LSTM biases, merge
    Wx/Wh for upper layers, pre-scale i/f/o gate columns by 0.5 (for the
    single-tanh gate trick), and optionally cast matmul operands to bf16."""
    lstm = params["lstm"]
    H = lstm[0]["whh"].shape[1]
    col_scale = np.full((1, 4 * H), 0.5, np.float32)
    col_scale[:, 2 * H:3 * H] = 1.0            # g lanes unscaled
    col_scale = jnp.asarray(col_scale)

    def scale(w):                              # w: (rows, 4H)
        return w * col_scale

    l0 = lstm[0]
    kp = {
        "wx0": scale(jnp.transpose(l0["wih"]).astype(jnp.float32)).astype(matmul_dtype),
        "wh0": scale(jnp.transpose(l0["whh"]).astype(jnp.float32)).astype(matmul_dtype),
        "b0": scale((l0["bih"] + l0["bhh"]).reshape(1, -1).astype(jnp.float32)),
        "wm": [],
        "bm": [],
    }
    for layer in lstm[1:]:
        wm = jnp.concatenate([jnp.transpose(layer["wih"]),
                              jnp.transpose(layer["whh"])], axis=0).astype(jnp.float32)
        kp["wm"].append(scale(wm).astype(matmul_dtype))          # (2H, 4H)
        kp["bm"].append(scale((layer["bih"] + layer["bhh"])
                              .reshape(1, -1).astype(jnp.float32)))
    kp["w1"] = jnp.transpose(params["w1"]).astype(matmul_dtype)  # (H, H)
    kp["b1"] = params["b1"].reshape(1, -1).astype(jnp.float32)
    kp["w2"] = jnp.transpose(params["w2"]).astype(matmul_dtype)  # (H, O)
    kp["b2"] = params["b2"].reshape(1, -1).astype(jnp.float32)
    return kp


def lstm_generator_forward(kparams, x, hidden=None, *, unroll_t_max=_UNROLL_T_MAX):
    """Equivalent of LSTMGenerator.forward(x, hidden=None) in eval mode.

    x: (B, T, input_dim) -> (output (B, T, output_dim), (h_n, c_n))
    h_n, c_n: (num_layers, B, hidden_dim)
    """
    B, T, D = x.shape
    L = 1 + len(kparams["wm"])
    H = kparams["wh0"].shape[0]
    O = kparams["w2"].shape[1]

    if hidden is None:
        h0 = jnp.zeros((L, B, H), jnp.float32)
        c0 = jnp.zeros((L, B, H), jnp.float32)
    else:
        h0, c0 = hidden
        h0 = h0.astype(jnp.float32)
        c0 = c0.astype(jnp.float32)

    # Layout plumbing kept OUT of the kernel: time-major flatten of x so each
    # per-step slice inside the kernel is a contiguous leading-dim (B, .) tile.
    x_tm = jnp.transpose(x.astype(jnp.float32), (1, 0, 2)).reshape(T * B, D)

    unrolled = T <= unroll_t_max
    flat_w = [kparams["wx0"], kparams["wh0"], kparams["b0"]]
    for wm, bm in zip(kparams["wm"], kparams["bm"]):
        flat_w += [wm, bm]
    flat_w += [kparams["w1"], kparams["b1"], kparams["w2"], kparams["b2"]]

    scratch = []
    if not unrolled:
        # Time-major scratch only for the long-T (fori_loop) path.
        scratch = [pltpu.VMEM((T, B, 4 * H), jnp.float32),   # hoisted x@Wx0+b0
                   pltpu.VMEM((T, B, H), jnp.float32)]       # top-layer h sequence

    out_tm, hN, cN = pl.pallas_call(
        _make_fused_kernel(L, B, T, D, H, O, unrolled),
        out_shape=(jax.ShapeDtypeStruct((T * B, O), jnp.float32),
                   jax.ShapeDtypeStruct((L, B, H), jnp.float32),
                   jax.ShapeDtypeStruct((L, B, H), jnp.float32)),
        scratch_shapes=scratch,
    )(x_tm, h0, c0, *flat_w)

    out = jnp.transpose(out_tm.reshape(T, B, O), (1, 0, 2))  # back to batch-first
    return out, (hN, cN)


# ----------------------------------------------------------------------------
# Deterministic parameter init (PyTorch-style U(-1/sqrt(H), 1/sqrt(H)))
# ----------------------------------------------------------------------------
def init_params(key, input_dim, hidden_dim, output_dim, num_layers=3):
    k = 1.0 / np.sqrt(hidden_dim)
    params = {"lstm": []}
    for l in range(num_layers):
        d_in = input_dim if l == 0 else hidden_dim
        key, k1, k2, k3, k4 = jax.random.split(key, 5)
        params["lstm"].append({
            "wih": jax.random.uniform(k1, (4 * hidden_dim, d_in), jnp.float32, -k, k),
            "whh": jax.random.uniform(k2, (4 * hidden_dim, hidden_dim), jnp.float32, -k, k),
            "bih": jax.random.uniform(k3, (4 * hidden_dim,), jnp.float32, -k, k),
            "bhh": jax.random.uniform(k4, (4 * hidden_dim,), jnp.float32, -k, k),
        })
    key, k1, k2, k3, k4 = jax.random.split(key, 5)
    params["w1"] = jax.random.uniform(k1, (hidden_dim, hidden_dim), jnp.float32, -k, k)
    params["b1"] = jax.random.uniform(k2, (hidden_dim,), jnp.float32, -k, k)
    params["w2"] = jax.random.uniform(k3, (output_dim, hidden_dim), jnp.float32, -k, k)
    params["b2"] = jax.random.uniform(k4, (output_dim,), jnp.float32, -k, k)
    return params


# ----------------------------------------------------------------------------
# Pure-JAX reference (for correctness check)
# ----------------------------------------------------------------------------
def reference_forward(params, x):
    B, T, _ = x.shape
    H = params["lstm"][0]["whh"].shape[1]
    h_seq = x.astype(jnp.float32)
    hs, cs = [], []
    for layer in params["lstm"]:
        wih_t, whh_t = layer["wih"].T, layer["whh"].T
        b = layer["bih"] + layer["bhh"]
        h = jnp.zeros((B, H), jnp.float32)
        c = jnp.zeros((B, H), jnp.float32)
        ys = []
        for t in range(T):
            gates = (jnp.dot(h_seq[:, t], wih_t, preferred_element_type=jnp.float32)
                     + jnp.dot(h, whh_t, preferred_element_type=jnp.float32) + b)
            i = jax.nn.sigmoid(gates[:, 0:H])
            f = jax.nn.sigmoid(gates[:, H:2 * H])
            g = jnp.tanh(gates[:, 2 * H:3 * H])
            o = jax.nn.sigmoid(gates[:, 3 * H:4 * H])
            c = f * c + i * g
            h = o * jnp.tanh(c)
            ys.append(h)
        h_seq = jnp.stack(ys, axis=1)
        hs.append(h)
        cs.append(c)
    z = jnp.maximum(jnp.dot(h_seq, params["w1"].T,
                            preferred_element_type=jnp.float32) + params["b1"], 0.0)
    out = jnp.tanh(jnp.dot(z, params["w2"].T,
                           preferred_element_type=jnp.float32) + params["b2"])
    return out, (jnp.stack(hs), jnp.stack(cs))


# ----------------------------------------------------------------------------
if __name__ == "__main__":
    B, T = 2, 8
    input_dim, hidden_dim, output_dim, num_layers = 8, 32, 4, 3

    key = jax.random.PRNGKey(0)
    key, pkey, xkey = jax.random.split(key, 3)
    params = init_params(pkey, input_dim, hidden_dim, output_dim, num_layers)
    x = jax.random.normal(xkey, (B, T, input_dim), jnp.float32)

    ref_out, (ref_h, ref_c) = reference_forward(params, x)

    fwd = jax.jit(lstm_generator_forward, static_argnames=("unroll_t_max",))

    # --- f32 matmul operands, unrolled time loop (the default path) ---------
    kparams = prepare_kernel_params(params)
    out, (h_n, c_n) = fwd(kparams, x)
    jax.block_until_ready((out, h_n, c_n))
    np.testing.assert_allclose(np.asarray(out), np.asarray(ref_out), rtol=1e-3, atol=1e-3)
    np.testing.assert_allclose(np.asarray(h_n), np.asarray(ref_h), rtol=1e-3, atol=1e-3)
    np.testing.assert_allclose(np.asarray(c_n), np.asarray(ref_c), rtol=1e-3, atol=1e-3)
    assert out.shape == (B, T, output_dim)
    assert h_n.shape == (num_layers, B, hidden_dim)
    assert c_n.shape == (num_layers, B, hidden_dim)

    # --- f32, forced fori_loop (long-T) path, exercises time-major scratch --
    out2, (h2, c2) = fwd(kparams, x, unroll_t_max=0)
    jax.block_until_ready((out2, h2, c2))
    np.testing.assert_allclose(np.asarray(out2), np.asarray(ref_out), rtol=1e-3, atol=1e-3)
    np.testing.assert_allclose(np.asarray(h2), np.asarray(ref_h), rtol=1e-3, atol=1e-3)
    np.testing.assert_allclose(np.asarray(c2), np.asarray(ref_c), rtol=1e-3, atol=1e-3)

    # --- bf16 matmul operands (f32 elementwise/cell state), looser tolerance -
    kparams_bf16 = prepare_kernel_params(params, matmul_dtype=jnp.bfloat16)
    out3, (h3, c3) = fwd(kparams_bf16, x)
    jax.block_until_ready((out3, h3, c3))
    np.testing.assert_allclose(np.asarray(out3), np.asarray(ref_out), rtol=5e-2, atol=5e-2)
    np.testing.assert_allclose(np.asarray(h3), np.asarray(ref_h), rtol=5e-2, atol=5e-2)
    np.testing.assert_allclose(np.asarray(c3), np.asarray(ref_c), rtol=5e-2, atol=5e-2)

    print("KERNEL_OK")
</pallas_src>

<mosaic_0001>
module attributes {stable_mosaic.version = 11 : i64} {
  func.func @kernel(%arg0: memref<16x8xf32, #tpu.memory_space<vmem>>, %arg1: memref<3x2x32xf32, #tpu.memory_space<vmem>>, %arg2: memref<3x2x32xf32, #tpu.memory_space<vmem>>, %arg3: memref<8x128xf32, #tpu.memory_space<vmem>>, %arg4: memref<32x128xf32, #tpu.memory_space<vmem>>, %arg5: memref<1x128xf32, #tpu.memory_space<vmem>>, %arg6: memref<64x128xf32, #tpu.memory_space<vmem>>, %arg7: memref<1x128xf32, #tpu.memory_space<vmem>>, %arg8: memref<64x128xf32, #tpu.memory_space<vmem>>, %arg9: memref<1x128xf32, #tpu.memory_space<vmem>>, %arg10: memref<32x32xf32, #tpu.memory_space<vmem>>, %arg11: memref<1x32xf32, #tpu.memory_space<vmem>>, %arg12: memref<32x4xf32, #tpu.memory_space<vmem>>, %arg13: memref<1x4xf32, #tpu.memory_space<vmem>>, %arg14: memref<16x4xf32, #tpu.memory_space<vmem>>, %arg15: memref<3x2x32xf32, #tpu.memory_space<vmem>>, %arg16: memref<3x2x32xf32, #tpu.memory_space<vmem>>) attributes {dimension_semantics = [], scalar_prefetch = 0 : i64, scratch_operands = 0 : i64, tpu.core_type = #tpu.core_type<tc>} {
    %c0 = arith.constant 0 : index
    %c0_0 = arith.constant 0 : index
    %0 = vector.load %arg4[%c0, %c0_0] : memref<32x128xf32, #tpu.memory_space<vmem>>, vector<32x128xf32>
    %c0_1 = arith.constant 0 : index
    %c0_2 = arith.constant 0 : index
    %1 = vector.load %arg6[%c0_1, %c0_2] : memref<64x128xf32, #tpu.memory_space<vmem>>, vector<64x128xf32>
    %c0_3 = arith.constant 0 : index
    %c0_4 = arith.constant 0 : index
    %2 = vector.load %arg8[%c0_3, %c0_4] : memref<64x128xf32, #tpu.memory_space<vmem>>, vector<64x128xf32>
    %c0_5 = arith.constant 0 : index
    %c0_6 = arith.constant 0 : index
    %3 = vector.load %arg7[%c0_5, %c0_6] : memref<1x128xf32, #tpu.memory_space<vmem>>, vector<1x128xf32>
    %4 = vector.shape_cast %3 : vector<1x128xf32> to vector<1x128xf32>
    %5 = vector.broadcast %4 : vector<1x128xf32> to vector<2x128xf32>
    %c0_7 = arith.constant 0 : index
    %c0_8 = arith.constant 0 : index
    %6 = vector.load %arg9[%c0_7, %c0_8] : memref<1x128xf32, #tpu.memory_space<vmem>>, vector<1x128xf32>
    %7 = vector.shape_cast %6 : vector<1x128xf32> to vector<1x128xf32>
    %8 = vector.broadcast %7 : vector<1x128xf32> to vector<2x128xf32>
    %9 = tpu.iota {dimensions = array<i32: 1>} : vector<1x128xi32>
    %c64_i32 = arith.constant 64 : i32
    %10 = vector.broadcast %c64_i32 : i32 to vector<1x128xi32>
    %11 = arith.cmpi sge, %9, %10 : vector<1x128xi32>
    %c96_i32 = arith.constant 96 : i32
    %12 = vector.broadcast %c96_i32 : i32 to vector<1x128xi32>
    %13 = arith.cmpi slt, %9, %12 : vector<1x128xi32>
    %14 = arith.andi %11, %13 : vector<1x128xi1>
    %cst = arith.constant 1.000000e+00 : f32
    %cst_9 = arith.constant 5.000000e-01 : f32
    %15 = vector.broadcast %cst : f32 to vector<1x128xf32>
    %16 = vector.broadcast %cst_9 : f32 to vector<1x128xf32>
    %17 = arith.select %14, %15, %16 : vector<1x128xi1>, vector<1x128xf32>
    %18 = vector.shape_cast %17 : vector<1x128xf32> to vector<1x128xf32>
    %19 = vector.broadcast %18 : vector<1x128xf32> to vector<2x128xf32>
    %cst_10 = arith.constant 1.000000e+00 : f32
    %20 = vector.broadcast %cst_10 : f32 to vector<2x128xf32>
    %21 = arith.subf %20, %19 : vector<2x128xf32>
    %c0_11 = arith.constant 0 : index
    %c0_12 = arith.constant 0 : index
    %22 = vector.load %arg0[%c0_11, %c0_12] : memref<16x8xf32, #tpu.memory_space<vmem>>, vector<16x8xf32>
    %c0_13 = arith.constant 0 : index
    %c0_14 = arith.constant 0 : index
    %23 = vector.load %arg3[%c0_13, %c0_14] : memref<8x128xf32, #tpu.memory_space<vmem>>, vector<8x128xf32>
    %cst_15 = arith.constant dense<0.000000e+00> : vector<16x128xf32>
    %24 = tpu.matmul %22, %23, %cst_15 {dimension_numbers = #tpu.dot_dimension_numbers<[1], [0], [0], [1], [0, 0, 1, 1], [], []>} : vector<16x8xf32>, vector<8x128xf32>, vector<16x128xf32> -> vector<16x128xf32>
    %c0_16 = arith.constant 0 : index
    %c0_17 = arith.constant 0 : index
    %25 = vector.load %arg5[%c0_16, %c0_17] : memref<1x128xf32, #tpu.memory_space<vmem>>, vector<1x128xf32>
    %26 = vector.broadcast %25 : vector<1x128xf32> to vector<16x128xf32>
    %27 = arith.addf %24, %26 : vector<16x128xf32>
    %c0_18 = arith.constant 0 : index
    %c0_19 = arith.constant 0 : index
    %c0_20 = arith.constant 0 : index
    %28 = vector.load %arg1[%c0_18, %c0_19, %c0_20] : memref<3x2x32xf32, #tpu.memory_space<vmem>>, vector<1x2x32xf32>
    %29 = vector.shape_cast %28 : vector<1x2x32xf32> to vector<2x32xf32>
    %c1 = arith.constant 1 : index
    %c0_21 = arith.constant 0 : index
    %c0_22 = arith.constant 0 : index
    %30 = vector.load %arg1[%c1, %c0_21, %c0_22] : memref<3x2x32xf32, #tpu.memory_space<vmem>>, vector<1x2x32xf32>
    %31 = vector.shape_cast %30 : vector<1x2x32xf32> to vector<2x32xf32>
    %c2 = arith.constant 2 : index
    %c0_23 = arith.constant 0 : index
    %c0_24 = arith.constant 0 : index
    %32 = vector.load %arg1[%c2, %c0_23, %c0_24] : memref<3x2x32xf32, #tpu.memory_space<vmem>>, vector<1x2x32xf32>
    %33 = vector.shape_cast %32 : vector<1x2x32xf32> to vector<2x32xf32>
    %c0_25 = arith.constant 0 : index
    %c0_26 = arith.constant 0 : index
    %c0_27 = arith.constant 0 : index
    %34 = vector.load %arg2[%c0_25, %c0_26, %c0_27] : memref<3x2x32xf32, #tpu.memory_space<vmem>>, vector<1x2x32xf32>
    %35 = vector.shape_cast %34 : vector<1x2x32xf32> to vector<2x32xf32>
    %c1_28 = arith.constant 1 : index
    %c0_29 = arith.constant 0 : index
    %c0_30 = arith.constant 0 : index
    %36 = vector.load %arg2[%c1_28, %c0_29, %c0_30] : memref<3x2x32xf32, #tpu.memory_space<vmem>>, vector<1x2x32xf32>
    %37 = vector.shape_cast %36 : vector<1x2x32xf32> to vector<2x32xf32>
    %c2_31 = arith.constant 2 : index
    %c0_32 = arith.constant 0 : index
    %c0_33 = arith.constant 0 : index
    %38 = vector.load %arg2[%c2_31, %c0_32, %c0_33] : memref<3x2x32xf32, #tpu.memory_space<vmem>>, vector<1x2x32xf32>
    %39 = vector.shape_cast %38 : vector<1x2x32xf32> to vector<2x32xf32>
    %40 = vector.extract_strided_slice %27 {offsets = [0, 0], sizes = [2, 128], strides = [1, 1]} : vector<16x128xf32> to vector<2x128xf32>
    %cst_34 = arith.constant dense<0.000000e+00> : vector<2x128xf32>
    %41 = tpu.matmul %29, %0, %cst_34 {dimension_numbers = #tpu.dot_dimension_numbers<[1], [0], [0], [1], [0, 0, 1, 1], [], []>} : vector<2x32xf32>, vector<32x128xf32>, vector<2x128xf32> -> vector<2x128xf32>
    %42 = arith.addf %40, %41 : vector<2x128xf32>
    %43 = math.tanh %42 : vector<2x128xf32>
    %44 = arith.mulf %43, %19 : vector<2x128xf32>
    %45 = arith.addf %44, %21 : vector<2x128xf32>
    %46 = vector.extract_strided_slice %45 {offsets = [0, 0], sizes = [2, 32], strides = [1, 1]} : vector<2x128xf32> to vector<2x32xf32>
    %47 = vector.extract_strided_slice %45 {offsets = [0, 32], sizes = [2, 32], strides = [1, 1]} : vector<2x128xf32> to vector<2x32xf32>
    %48 = vector.extract_strided_slice %45 {offsets = [0, 64], sizes = [2, 32], strides = [1, 1]} : vector<2x128xf32> to vector<2x32xf32>
    %49 = vector.extract_strided_slice %45 {offsets = [0, 96], sizes = [2, 32], strides = [1, 1]} : vector<2x128xf32> to vector<2x32xf32>
    %50 = arith.mulf %47, %35 : vector<2x32xf32>
    %51 = arith.mulf %46, %48 : vector<2x32xf32>
    %52 = arith.addf %50, %51 : vector<2x32xf32>
    %53 = math.tanh %52 : vector<2x32xf32>
    %54 = arith.mulf %49, %53 : vector<2x32xf32>
    %55 = tpu.concatenate %54, %31 in 1 : vector<2x32xf32>, vector<2x32xf32> -> vector<2x64xf32>
    %cst_35 = arith.constant dense<0.000000e+00> : vector<2x128xf32>
    %56 = tpu.matmul %55, %1, %cst_35 {dimension_numbers = #tpu.dot_dimension_numbers<[1], [0], [0], [1], [0, 0, 1, 1], [], []>} : vector<2x64xf32>, vector<64x128xf32>, vector<2x128xf32> -> vector<2x128xf32>
    %57 = arith.addf %56, %5 : vector<2x128xf32>
    %58 = math.tanh %57 : vector<2x128xf32>
    %59 = arith.mulf %58, %19 : vector<2x128xf32>
    %60 = arith.addf %59, %21 : vector<2x128xf32>
    %61 = vector.extract_strided_slice %60 {offsets = [0, 0], sizes = [2, 32], strides = [1, 1]} : vector<2x128xf32> to vector<2x32xf32>
    %62 = vector.extract_strided_slice %60 {offsets = [0, 32], sizes = [2, 32], strides = [1, 1]} : vector<2x128xf32> to vector<2x32xf32>
    %63 = vector.extract_strided_slice %60 {offsets = [0, 64], sizes = [2, 32], strides = [1, 1]} : vector<2x128xf32> to vector<2x32xf32>
    %64 = vector.extract_strided_slice %60 {offsets = [0, 96], sizes = [2, 32], strides = [1, 1]} : vector<2x128xf32> to vector<2x32xf32>
    %65 = arith.mulf %62, %37 : vector<2x32xf32>
    %66 = arith.mulf %61, %63 : vector<2x32xf32>
    %67 = arith.addf %65, %66 : vector<2x32xf32>
    %68 = math.tanh %67 : vector<2x32xf32>
    %69 = arith.mulf %64, %68 : vector<2x32xf32>
    %70 = tpu.concatenate %69, %33 in 1 : vector<2x32xf32>, vector<2x32xf32> -> vector<2x64xf32>
    %cst_36 = arith.constant dense<0.000000e+00> : vector<2x128xf32>
    %71 = tpu.matmul %70, %2, %cst_36 {dimension_numbers = #tpu.dot_dimension_numbers<[1], [0], [0], [1], [0, 0, 1, 1], [], []>} : vector<2x64xf32>, vector<64x128xf32>, vector<2x128xf32> -> vector<2x128xf32>
    %72 = arith.addf %71, %8 : vector<2x128xf32>
    %73 = math.tanh %72 : vector<2x128xf32>
    %74 = arith.mulf %73, %19 : vector<2x128xf32>
    %75 = arith.addf %74, %21 : vector<2x128xf32>
    %76 = vector.extract_strided_slice %75 {offsets = [0, 0], sizes = [2, 32], strides = [1, 1]} : vector<2x128xf32> to vector<2x32xf32>
    %77 = vector.extract_strided_slice %75 {offsets = [0, 32], sizes = [2, 32], strides = [1, 1]} : vector<2x128xf32> to vector<2x32xf32>
    %78 = vector.extract_strided_slice %75 {offsets = [0, 64], sizes = [2, 32], strides = [1, 1]} : vector<2x128xf32> to vector<2x32xf32>
    %79 = vector.extract_strided_slice %75 {offsets = [0, 96], sizes = [2, 32], strides = [1, 1]} : vector<2x128xf32> to vector<2x32xf32>
    %80 = arith.mulf %77, %39 : vector<2x32xf32>
    %81 = arith.mulf %76, %78 : vector<2x32xf32>
    %82 = arith.addf %80, %81 : vector<2x32xf32>
    %83 = math.tanh %82 : vector<2x32xf32>
    %84 = arith.mulf %79, %83 : vector<2x32xf32>
    %85 = vector.extract_strided_slice %27 {offsets = [2, 0], sizes = [2, 128], strides = [1, 1]} : vector<16x128xf32> to vector<2x128xf32>
    %cst_37 = arith.constant dense<0.000000e+00> : vector<2x128xf32>
    %86 = tpu.matmul %54, %0, %cst_37 {dimension_numbers = #tpu.dot_dimension_numbers<[1], [0], [0], [1], [0, 0, 1, 1], [], []>} : vector<2x32xf32>, vector<32x128xf32>, vector<2x128xf32> -> vector<2x128xf32>
    %87 = arith.addf %85, %86 : vector<2x128xf32>
    %88 = math.tanh %87 : vector<2x128xf32>
    %89 = arith.mulf %88, %19 : vector<2x128xf32>
    %90 = arith.addf %89, %21 : vector<2x128xf32>
    %91 = vector.extract_strided_slice %90 {offsets = [0, 0], sizes = [2, 32], strides = [1, 1]} : vector<2x128xf32> to vector<2x32xf32>
    %92 = vector.extract_strided_slice %90 {offsets = [0, 32], sizes = [2, 32], strides = [1, 1]} : vector<2x128xf32> to vector<2x32xf32>
    %93 = vector.extract_strided_slice %90 {offsets = [0, 64], sizes = [2, 32], strides = [1, 1]} : vector<2x128xf32> to vector<2x32xf32>
    %94 = vector.extract_strided_slice %90 {offsets = [0, 96], sizes = [2, 32], strides = [1, 1]} : vector<2x128xf32> to vector<2x32xf32>
    %95 = arith.mulf %92, %52 : vector<2x32xf32>
    %96 = arith.mulf %91, %93 : vector<2x32xf32>
    %97 = arith.addf %95, %96 : vector<2x32xf32>
    %98 = math.tanh %97 : vector<2x32xf32>
    %99 = arith.mulf %94, %98 : vector<2x32xf32>
    %100 = tpu.concatenate %99, %69 in 1 : vector<2x32xf32>, vector<2x32xf32> -> vector<2x64xf32>
    %cst_38 = arith.constant dense<0.000000e+00> : vector<2x128xf32>
    %101 = tpu.matmul %100, %1, %cst_38 {dimension_numbers = #tpu.dot_dimension_numbers<[1], [0], [0], [1], [0, 0, 1, 1], [], []>} : vector<2x64xf32>, vector<64x128xf32>, vector<2x128xf32> -> vector<2x128xf32>
    %102 = arith.addf %101, %5 : vector<2x128xf32>
    %103 = math.tanh %102 : vector<2x128xf32>
    %104 = arith.mulf %103, %19 : vector<2x128xf32>
    %105 = arith.addf %104, %21 : vector<2x128xf32>
    %106 = vector.extract_strided_slice %105 {offsets = [0, 0], sizes = [2, 32], strides = [1, 1]} : vector<2x128xf32> to vector<2x32xf32>
    %107 = vector.extract_strided_slice %105 {offsets = [0, 32], sizes = [2, 32], strides = [1, 1]} : vector<2x128xf32> to vector<2x32xf32>
    %108 = vector.extract_strided_slice %105 {offsets = [0, 64], sizes = [2, 32], strides = [1, 1]} : vector<2x128xf32> to vector<2x32xf32>
    %109 = vector.extract_strided_slice %105 {offsets = [0, 96], sizes = [2, 32], strides = [1, 1]} : vector<2x128xf32> to vector<2x32xf32>
    %110 = arith.mulf %107, %67 : vector<2x32xf32>
    %111 = arith.mulf %106, %108 : vector<2x32xf32>
    %112 = arith.addf %110, %111 : vector<2x32xf32>
    %113 = math.tanh %112 : vector<2x32xf32>
    %114 = arith.mulf %109, %113 : vector<2x32xf32>
    %115 = tpu.concatenate %114, %84 in 1 : vector<2x32xf32>, vector<2x32xf32> -> vector<2x64xf32>
    %cst_39 = arith.constant dense<0.000000e+00> : vector<2x128xf32>
    %116 = tpu.matmul %115, %2, %cst_39 {dimension_numbers = #tpu.dot_dimension_numbers<[1], [0], [0], [1], [0, 0, 1, 1], [], []>} : vector<2x64xf32>, vector<64x128xf32>, vector<2x128xf32> -> vector<2x128xf32>
    %117 = arith.addf %116, %8 : vector<2x128xf32>
    %118 = math.tanh %117 : vector<2x128xf32>
    %119 = arith.mulf %118, %19 : vector<2x128xf32>
    %120 = arith.addf %119, %21 : vector<2x128xf32>
    %121 = vector.extract_strided_slice %120 {offsets = [0, 0], sizes = [2, 32], strides = [1, 1]} : vector<2x128xf32> to vector<2x32xf32>
    %122 = vector.extract_strided_slice %120 {offsets = [0, 32], sizes = [2, 32], strides = [1, 1]} : vector<2x128xf32> to vector<2x32xf32>
    %123 = vector.extract_strided_slice %120 {offsets = [0, 64], sizes = [2, 32], strides = [1, 1]} : vector<2x128xf32> to vector<2x32xf32>
    %124 = vector.extract_strided_slice %120 {offsets = [0, 96], sizes = [2, 32], strides = [1, 1]} : vector<2x128xf32> to vector<2x32xf32>
    %125 = arith.mulf %122, %82 : vector<2x32xf32>
    %126 = arith.mulf %121, %123 : vector<2x32xf32>
    %127 = arith.addf %125, %126 : vector<2x32xf32>
    %128 = math.tanh %127 : vector<2x32xf32>
    %129 = arith.mulf %124, %128 : vector<2x32xf32>
    %130 = vector.extract_strided_slice %27 {offsets = [4, 0], sizes = [2, 128], strides = [1, 1]} : vector<16x128xf32> to vector<2x128xf32>
    %cst_40 = arith.constant dense<0.000000e+00> : vector<2x128xf32>
    %131 = tpu.matmul %99, %0, %cst_40 {dimension_numbers = #tpu.dot_dimension_numbers<[1], [0], [0], [1], [0, 0, 1, 1], [], []>} : vector<2x32xf32>, vector<32x128xf32>, vector<2x128xf32> -> vector<2x128xf32>
    %132 = arith.addf %130, %131 : vector<2x128xf32>
    %133 = math.tanh %132 : vector<2x128xf32>
    %134 = arith.mulf %133, %19 : vector<2x128xf32>
    %135 = arith.addf %134, %21 : vector<2x128xf32>
    %136 = vector.extract_strided_slice %135 {offsets = [0, 0], sizes = [2, 32], strides = [1, 1]} : vector<2x128xf32> to vector<2x32xf32>
    %137 = vector.extract_strided_slice %135 {offsets = [0, 32], sizes = [2, 32], strides = [1, 1]} : vector<2x128xf32> to vector<2x32xf32>
    %138 = vector.extract_strided_slice %135 {offsets = [0, 64], sizes = [2, 32], strides = [1, 1]} : vector<2x128xf32> to vector<2x32xf32>
    %139 = vector.extract_strided_slice %135 {offsets = [0, 96], sizes = [2, 32], strides = [1, 1]} : vector<2x128xf32> to vector<2x32xf32>
    %140 = arith.mulf %137, %97 : vector<2x32xf32>
    %141 = arith.mulf %136, %138 : vector<2x32xf32>
    %142 = arith.addf %140, %141 : vector<2x32xf32>
    %143 = math.tanh %142 : vector<2x32xf32>
    %144 = arith.mulf %139, %143 : vector<2x32xf32>
    %145 = tpu.concatenate %144, %114 in 1 : vector<2x32xf32>, vector<2x32xf32> -> vector<2x64xf32>
    %cst_41 = arith.constant dense<0.000000e+00> : vector<2x128xf32>
    %146 = tpu.matmul %145, %1, %cst_41 {dimension_numbers = #tpu.dot_dimension_numbers<[1], [0], [0], [1], [0, 0, 1, 1], [], []>} : vector<2x64xf32>, vector<64x128xf32>, vector<2x128xf32> -> vector<2x128xf32>
    %147 = arith.addf %146, %5 : vector<2x128xf32>
    %148 = math.tanh %147 : vector<2x128xf32>
    %149 = arith.mulf %148, %19 : vector<2x128xf32>
    %150 = arith.addf %149, %21 : vector<2x128xf32>
    %151 = vector.extract_strided_slice %150 {offsets = [0, 0], sizes = [2, 32], strides = [1, 1]} : vector<2x128xf32> to vector<2x32xf32>
    %152 = vector.extract_strided_slice %150 {offsets = [0, 32], sizes = [2, 32], strides = [1, 1]} : vector<2x128xf32> to vector<2x32xf32>
    %153 = vector.extract_strided_slice %150 {offsets = [0, 64], sizes = [2, 32], strides = [1, 1]} : vector<2x128xf32> to vector<2x32xf32>
    %154 = vector.extract_strided_slice %150 {offsets = [0, 96], sizes = [2, 32], strides = [1, 1]} : vector<2x128xf32> to vector<2x32xf32>
    %155 = arith.mulf %152, %112 : vector<2x32xf32>
    %156 = arith.mulf %151, %153 : vector<2x32xf32>
    %157 = arith.addf %155, %156 : vector<2x32xf32>
    %158 = math.tanh %157 : vector<2x32xf32>
    %159 = arith.mulf %154, %158 : vector<2x32xf32>
    %160 = tpu.concatenate %159, %129 in 1 : vector<2x32xf32>, vector<2x32xf32> -> vector<2x64xf32>
    %cst_42 = arith.constant dense<0.000000e+00> : vector<2x128xf32>
    %161 = tpu.matmul %160, %2, %cst_42 {dimension_numbers = #tpu.dot_dimension_numbers<[1], [0], [0], [1], [0, 0, 1, 1], [], []>} : vector<2x64xf32>, vector<64x128xf32>, vector<2x128xf32> -> vector<2x128xf32>
    %162 = arith.addf %161, %8 : vector<2x128xf32>
    %163 = math.tanh %162 : vector<2x128xf32>
    %164 = arith.mulf %163, %19 : vector<2x128xf32>
    %165 = arith.addf %164, %21 : vector<2x128xf32>
    %166 = vector.extract_strided_slice %165 {offsets = [0, 0], sizes = [2, 32], strides = [1, 1]} : vector<2x128xf32> to vector<2x32xf32>
    %167 = vector.extract_strided_slice %165 {offsets = [0, 32], sizes = [2, 32], strides = [1, 1]} : vector<2x128xf32> to vector<2x32xf32>
    %168 = vector.extract_strided_slice %165 {offsets = [0, 64], sizes = [2, 32], strides = [1, 1]} : vector<2x128xf32> to vector<2x32xf32>
    %169 = vector.extract_strided_slice %165 {offsets = [0, 96], sizes = [2, 32], strides = [1, 1]} : vector<2x128xf32> to vector<2x32xf32>
    %170 = arith.mulf %167, %127 : vector<2x32xf32>
    %171 = arith.mulf %166, %168 : vector<2x32xf32>
    %172 = arith.addf %170, %171 : vector<2x32xf32>
    %173 = math.tanh %172 : vector<2x32xf32>
    %174 = arith.mulf %169, %173 : vector<2x32xf32>
    %175 = vector.extract_strided_slice %27 {offsets = [6, 0], sizes = [2, 128], strides = [1, 1]} : vector<16x128xf32> to vector<2x128xf32>
    %cst_43 = arith.constant dense<0.000000e+00> : vector<2x128xf32>
    %176 = tpu.matmul %144, %0, %cst_43 {dimension_numbers = #tpu.dot_dimension_numbers<[1], [0], [0], [1], [0, 0, 1, 1], [], []>} : vector<2x32xf32>, vector<32x128xf32>, vector<2x128xf32> -> vector<2x128xf32>
    %177 = arith.addf %175, %176 : vector<2x128xf32>
    %178 = math.tanh %177 : vector<2x128xf32>
    %179 = arith.mulf %178, %19 : vector<2x128xf32>
    %180 = arith.addf %179, %21 : vector<2x128xf32>
    %181 = vector.extract_strided_slice %180 {offsets = [0, 0], sizes = [2, 32], strides = [1, 1]} : vector<2x128xf32> to vector<2x32xf32>
    %182 = vector.extract_strided_slice %180 {offsets = [0, 32], sizes = [2, 32], strides = [1, 1]} : vector<2x128xf32> to vector<2x32xf32>
    %183 = vector.extract_strided_slice %180 {offsets = [0, 64], sizes = [2, 32], strides = [1, 1]} : vector<2x128xf32> to vector<2x32xf32>
    %184 = vector.extract_strided_slice %180 {offsets = [0, 96], sizes = [2, 32], strides = [1, 1]} : vector<2x128xf32> to vector<2x32xf32>
    %185 = arith.mulf %182, %142 : vector<2x32xf32>
    %186 = arith.mulf %181, %183 : vector<2x32xf32>
    %187 = arith.addf %185, %186 : vector<2x32xf32>
    %188 = math.tanh %187 : vector<2x32xf32>
    %189 = arith.mulf %184, %188 : vector<2x32xf32>
    %190 = tpu.concatenate %189, %159 in 1 : vector<2x32xf32>, vector<2x32xf32> -> vector<2x64xf32>
    %cst_44 = arith.constant dense<0.000000e+00> : vector<2x128xf32>
    %191 = tpu.matmul %190, %1, %cst_44 {dimension_numbers = #tpu.dot_dimension_numbers<[1], [0], [0], [1], [0, 0, 1, 1], [], []>} : vector<2x64xf32>, vector<64x128xf32>, vector<2x128xf32> -> vector<2x128xf32>
    %192 = arith.addf %191, %5 : vector<2x128xf32>
    %193 = math.tanh %192 : vector<2x128xf32>
    %194 = arith.mulf %193, %19 : vector<2x128xf32>
    %195 = arith.addf %194, %21 : vector<2x128xf32>
    %196 = vector.extract_strided_slice %195 {offsets = [0, 0], sizes = [2, 32], strides = [1, 1]} : vector<2x128xf32> to vector<2x32xf32>
    %197 = vector.extract_strided_slice %195 {offsets = [0, 32], sizes = [2, 32], strides = [1, 1]} : vector<2x128xf32> to vector<2x32xf32>
    %198 = vector.extract_strided_slice %195 {offsets = [0, 64], sizes = [2, 32], strides = [1, 1]} : vector<2x128xf32> to vector<2x32xf32>
    %199 = vector.extract_strided_slice %195 {offsets = [0, 96], sizes = [2, 32], strides = [1, 1]} : vector<2x128xf32> to vector<2x32xf32>
    %200 = arith.mulf %197, %157 : vector<2x32xf32>
    %201 = arith.mulf %196, %198 : vector<2x32xf32>
    %202 = arith.addf %200, %201 : vector<2x32xf32>
    %203 = math.tanh %202 : vector<2x32xf32>
    %204 = arith.mulf %199, %203 : vector<2x32xf32>
    %205 = tpu.concatenate %204, %174 in 1 : vector<2x32xf32>, vector<2x32xf32> -> vector<2x64xf32>
    %cst_45 = arith.constant dense<0.000000e+00> : vector<2x128xf32>
    %206 = tpu.matmul %205, %2, %cst_45 {dimension_numbers = #tpu.dot_dimension_numbers<[1], [0], [0], [1], [0, 0, 1, 1], [], []>} : vector<2x64xf32>, vector<64x128xf32>, vector<2x128xf32> -> vector<2x128xf32>
    %207 = arith.addf %206, %8 : vector<2x128xf32>
    %208 = math.tanh %207 : vector<2x128xf32>
    %209 = arith.mulf %208, %19 : vector<2x128xf32>
    %210 = arith.addf %209, %21 : vector<2x128xf32>
    %211 = vector.extract_strided_slice %210 {offsets = [0, 0], sizes = [2, 32], strides = [1, 1]} : vector<2x128xf32> to vector<2x32xf32>
    %212 = vector.extract_strided_slice %210 {offsets = [0, 32], sizes = [2, 32], strides = [1, 1]} : vector<2x128xf32> to vector<2x32xf32>
    %213 = vector.extract_strided_slice %210 {offsets = [0, 64], sizes = [2, 32], strides = [1, 1]} : vector<2x128xf32> to vector<2x32xf32>
    %214 = vector.extract_strided_slice %210 {offsets = [0, 96], sizes = [2, 32], strides = [1, 1]} : vector<2x128xf32> to vector<2x32xf32>
    %215 = arith.mulf %212, %172 : vector<2x32xf32>
    %216 = arith.mulf %211, %213 : vector<2x32xf32>
    %217 = arith.addf %215, %216 : vector<2x32xf32>
    %218 = math.tanh %217 : vector<2x32xf32>
    %219 = arith.mulf %214, %218 : vector<2x32xf32>
    %220 = vector.extract_strided_slice %27 {offsets = [8, 0], sizes = [2, 128], strides = [1, 1]} : vector<16x128xf32> to vector<2x128xf32>
    %cst_46 = arith.constant dense<0.000000e+00> : vector<2x128xf32>
    %221 = tpu.matmul %189, %0, %cst_46 {dimension_numbers = #tpu.dot_dimension_numbers<[1], [0], [0], [1], [0, 0, 1, 1], [], []>} : vector<2x32xf32>, vector<32x128xf32>, vector<2x128xf32> -> vector<2x128xf32>
    %222 = arith.addf %220, %221 : vector<2x128xf32>
    %223 = math.tanh %222 : vector<2x128xf32>
    %224 = arith.mulf %223, %19 : vector<2x128xf32>
    %225 = arith.addf %224, %21 : vector<2x128xf32>
    %226 = vector.extract_strided_slice %225 {offsets = [0, 0], sizes = [2, 32], strides = [1, 1]} : vector<2x128xf32> to vector<2x32xf32>
    %227 = vector.extract_strided_slice %225 {offsets = [0, 32], sizes = [2, 32], strides = [1, 1]} : vector<2x128xf32> to vector<2x32xf32>
    %228 = vector.extract_strided_slice %225 {offsets = [0, 64], sizes = [2, 32], strides = [1, 1]} : vector<2x128xf32> to vector<2x32xf32>
    %229 = vector.extract_strided_slice %225 {offsets = [0, 96], sizes = [2, 32], strides = [1, 1]} : vector<2x128xf32> to vector<2x32xf32>
    %230 = arith.mulf %227, %187 : vector<2x32xf32>
    %231 = arith.mulf %226, %228 : vector<2x32xf32>
    %232 = arith.addf %230, %231 : vector<2x32xf32>
    %233 = math.tanh %232 : vector<2x32xf32>
    %234 = arith.mulf %229, %233 : vector<2x32xf32>
    %235 = tpu.concatenate %234, %204 in 1 : vector<2x32xf32>, vector<2x32xf32> -> vector<2x64xf32>
    %cst_47 = arith.constant dense<0.000000e+00> : vector<2x128xf32>
    %236 = tpu.matmul %235, %1, %cst_47 {dimension_numbers = #tpu.dot_dimension_numbers<[1], [0], [0], [1], [0, 0, 1, 1], [], []>} : vector<2x64xf32>, vector<64x128xf32>, vector<2x128xf32> -> vector<2x128xf32>
    %237 = arith.addf %236, %5 : vector<2x128xf32>
    %238 = math.tanh %237 : vector<2x128xf32>
    %239 = arith.mulf %238, %19 : vector<2x128xf32>
    %240 = arith.addf %239, %21 : vector<2x128xf32>
    %241 = vector.extract_strided_slice %240 {offsets = [0, 0], sizes = [2, 32], strides = [1, 1]} : vector<2x128xf32> to vector<2x32xf32>
    %242 = vector.extract_strided_slice %240 {offsets = [0, 32], sizes = [2, 32], strides = [1, 1]} : vector<2x128xf32> to vector<2x32xf32>
    %243 = vector.extract_strided_slice %240 {offsets = [0, 64], sizes = [2, 32], strides = [1, 1]} : vector<2x128xf32> to vector<2x32xf32>
    %244 = vector.extract_strided_slice %240 {offsets = [0, 96], sizes = [2, 32], strides = [1, 1]} : vector<2x128xf32> to vector<2x32xf32>
    %245 = arith.mulf %242, %202 : vector<2x32xf32>
    %246 = arith.mulf %241, %243 : vector<2x32xf32>
    %247 = arith.addf %245, %246 : vector<2x32xf32>
    %248 = math.tanh %247 : vector<2x32xf32>
    %249 = arith.mulf %244, %248 : vector<2x32xf32>
    %250 = tpu.concatenate %249, %219 in 1 : vector<2x32xf32>, vector<2x32xf32> -> vector<2x64xf32>
    %cst_48 = arith.constant dense<0.000000e+00> : vector<2x128xf32>
    %251 = tpu.matmul %250, %2, %cst_48 {dimension_numbers = #tpu.dot_dimension_numbers<[1], [0], [0], [1], [0, 0, 1, 1], [], []>} : vector<2x64xf32>, vector<64x128xf32>, vector<2x128xf32> -> vector<2x128xf32>
    %252 = arith.addf %251, %8 : vector<2x128xf32>
    %253 = math.tanh %252 : vector<2x128xf32>
    %254 = arith.mulf %253, %19 : vector<2x128xf32>
    %255 = arith.addf %254, %21 : vector<2x128xf32>
    %256 = vector.extract_strided_slice %255 {offsets = [0, 0], sizes = [2, 32], strides = [1, 1]} : vector<2x128xf32> to vector<2x32xf32>
    %257 = vector.extract_strided_slice %255 {offsets = [0, 32], sizes = [2, 32], strides = [1, 1]} : vector<2x128xf32> to vector<2x32xf32>
    %258 = vector.extract_strided_slice %255 {offsets = [0, 64], sizes = [2, 32], strides = [1, 1]} : vector<2x128xf32> to vector<2x32xf32>
    %259 = vector.extract_strided_slice %255 {offsets = [0, 96], sizes = [2, 32], strides = [1, 1]} : vector<2x128xf32> to vector<2x32xf32>
    %260 = arith.mulf %257, %217 : vector<2x32xf32>
    %261 = arith.mulf %256, %258 : vector<2x32xf32>
    %262 = arith.addf %260, %261 : vector<2x32xf32>
    %263 = math.tanh %262 : vector<2x32xf32>
    %264 = arith.mulf %259, %263 : vector<2x32xf32>
    %265 = vector.extract_strided_slice %27 {offsets = [10, 0], sizes = [2, 128], strides = [1, 1]} : vector<16x128xf32> to vector<2x128xf32>
    %cst_49 = arith.constant dense<0.000000e+00> : vector<2x128xf32>
    %266 = tpu.matmul %234, %0, %cst_49 {dimension_numbers = #tpu.dot_dimension_numbers<[1], [0], [0], [1], [0, 0, 1, 1], [], []>} : vector<2x32xf32>, vector<32x128xf32>, vector<2x128xf32> -> vector<2x128xf32>
    %267 = arith.addf %265, %266 : vector<2x128xf32>
    %268 = math.tanh %267 : vector<2x128xf32>
    %269 = arith.mulf %268, %19 : vector<2x128xf32>
    %270 = arith.addf %269, %21 : vector<2x128xf32>
    %271 = vector.extract_strided_slice %270 {offsets = [0, 0], sizes = [2, 32], strides = [1, 1]} : vector<2x128xf32> to vector<2x32xf32>
    %272 = vector.extract_strided_slice %270 {offsets = [0, 32], sizes = [2, 32], strides = [1, 1]} : vector<2x128xf32> to vector<2x32xf32>
    %273 = vector.extract_strided_slice %270 {offsets = [0, 64], sizes = [2, 32], strides = [1, 1]} : vector<2x128xf32> to vector<2x32xf32>
    %274 = vector.extract_strided_slice %270 {offsets = [0, 96], sizes = [2, 32], strides = [1, 1]} : vector<2x128xf32> to vector<2x32xf32>
    %275 = arith.mulf %272, %232 : vector<2x32xf32>
    %276 = arith.mulf %271, %273 : vector<2x32xf32>
    %277 = arith.addf %275, %276 : vector<2x32xf32>
    %278 = math.tanh %277 : vector<2x32xf32>
    %279 = arith.mulf %274, %278 : vector<2x32xf32>
    %280 = tpu.concatenate %279, %249 in 1 : vector<2x32xf32>, vector<2x32xf32> -> vector<2x64xf32>
    %cst_50 = arith.constant dense<0.000000e+00> : vector<2x128xf32>
    %281 = tpu.matmul %280, %1, %cst_50 {dimension_numbers = #tpu.dot_dimension_numbers<[1], [0], [0], [1], [0, 0, 1, 1], [], []>} : vector<2x64xf32>, vector<64x128xf32>, vector<2x128xf32> -> vector<2x128xf32>
    %282 = arith.addf %281, %5 : vector<2x128xf32>
    %283 = math.tanh %282 : vector<2x128xf32>
    %284 = arith.mulf %283, %19 : vector<2x128xf32>
    %285 = arith.addf %284, %21 : vector<2x128xf32>
    %286 = vector.extract_strided_slice %285 {offsets = [0, 0], sizes = [2, 32], strides = [1, 1]} : vector<2x128xf32> to vector<2x32xf32>
    %287 = vector.extract_strided_slice %285 {offsets = [0, 32], sizes = [2, 32], strides = [1, 1]} : vector<2x128xf32> to vector<2x32xf32>
    %288 = vector.extract_strided_slice %285 {offsets = [0, 64], sizes = [2, 32], strides = [1, 1]} : vector<2x128xf32> to vector<2x32xf32>
    %289 = vector.extract_strided_slice %285 {offsets = [0, 96], sizes = [2, 32], strides = [1, 1]} : vector<2x128xf32> to vector<2x32xf32>
    %290 = arith.mulf %287, %247 : vector<2x32xf32>
    %291 = arith.mulf %286, %288 : vector<2x32xf32>
    %292 = arith.addf %290, %291 : vector<2x32xf32>
    %293 = math.tanh %292 : vector<2x32xf32>
    %294 = arith.mulf %289, %293 : vector<2x32xf32>
    %295 = tpu.concatenate %294, %264 in 1 : vector<2x32xf32>, vector<2x32xf32> -> vector<2x64xf32>
    %cst_51 = arith.constant dense<0.000000e+00> : vector<2x128xf32>
    %296 = tpu.matmul %295, %2, %cst_51 {dimension_numbers = #tpu.dot_dimension_numbers<[1], [0], [0], [1], [0, 0, 1, 1], [], []>} : vector<2x64xf32>, vector<64x128xf32>, vector<2x128xf32> -> vector<2x128xf32>
    %297 = arith.addf %296, %8 : vector<2x128xf32>
    %298 = math.tanh %297 : vector<2x128xf32>
    %299 = arith.mulf %298, %19 : vector<2x128xf32>
    %300 = arith.addf %299, %21 : vector<2x128xf32>
    %301 = vector.extract_strided_slice %300 {offsets = [0, 0], sizes = [2, 32], strides = [1, 1]} : vector<2x128xf32> to vector<2x32xf32>
    %302 = vector.extract_strided_slice %300 {offsets = [0, 32], sizes = [2, 32], strides = [1, 1]} : vector<2x128xf32> to vector<2x32xf32>
    %303 = vector.extract_strided_slice %300 {offsets = [0, 64], sizes = [2, 32], strides = [1, 1]} : vector<2x128xf32> to vector<2x32xf32>
    %304 = vector.extract_strided_slice %300 {offsets = [0, 96], sizes = [2, 32], strides = [1, 1]} : vector<2x128xf32> to vector<2x32xf32>
    %305 = arith.mulf %302, %262 : vector<2x32xf32>
    %306 = arith.mulf %301, %303 : vector<2x32xf32>
    %307 = arith.addf %305, %306 : vector<2x32xf32>
    %308 = math.tanh %307 : vector<2x32xf32>
    %309 = arith.mulf %304, %308 : vector<2x32xf32>
    %310 = vector.extract_strided_slice %27 {offsets = [12, 0], sizes = [2, 128], strides = [1, 1]} : vector<16x128xf32> to vector<2x128xf32>
    %cst_52 = arith.constant dense<0.000000e+00> : vector<2x128xf32>
    %311 = tpu.matmul %279, %0, %cst_52 {dimension_numbers = #tpu.dot_dimension_numbers<[1], [0], [0], [1], [0, 0, 1, 1], [], []>} : vector<2x32xf32>, vector<32x128xf32>, vector<2x128xf32> -> vector<2x128xf32>
    %312 = arith.addf %310, %311 : vector<2x128xf32>
    %313 = math.tanh %312 : vector<2x128xf32>
    %314 = arith.mulf %313, %19 : vector<2x128xf32>
    %315 = arith.addf %314, %21 : vector<2x128xf32>
    %316 = vector.extract_strided_slice %315 {offsets = [0, 0], sizes = [2, 32], strides = [1, 1]} : vector<2x128xf32> to vector<2x32xf32>
    %317 = vector.extract_strided_slice %315 {offsets = [0, 32], sizes = [2, 32], strides = [1, 1]} : vector<2x128xf32> to vector<2x32xf32>
    %318 = vector.extract_strided_slice %315 {offsets = [0, 64], sizes = [2, 32], strides = [1, 1]} : vector<2x128xf32> to vector<2x32xf32>
    %319 = vector.extract_strided_slice %315 {offsets = [0, 96], sizes = [2, 32], strides = [1, 1]} : vector<2x128xf32> to vector<2x32xf32>
    %320 = arith.mulf %317, %277 : vector<2x32xf32>
    %321 = arith.mulf %316, %318 : vector<2x32xf32>
    %322 = arith.addf %320, %321 : vector<2x32xf32>
    %323 = math.tanh %322 : vector<2x32xf32>
    %324 = arith.mulf %319, %323 : vector<2x32xf32>
    %325 = tpu.concatenate %324, %294 in 1 : vector<2x32xf32>, vector<2x32xf32> -> vector<2x64xf32>
    %cst_53 = arith.constant dense<0.000000e+00> : vector<2x128xf32>
    %326 = tpu.matmul %325, %1, %cst_53 {dimension_numbers = #tpu.dot_dimension_numbers<[1], [0], [0], [1], [0, 0, 1, 1], [], []>} : vector<2x64xf32>, vector<64x128xf32>, vector<2x128xf32> -> vector<2x128xf32>
    %327 = arith.addf %326, %5 : vector<2x128xf32>
    %328 = math.tanh %327 : vector<2x128xf32>
    %329 = arith.mulf %328, %19 : vector<2x128xf32>
    %330 = arith.addf %329, %21 : vector<2x128xf32>
    %331 = vector.extract_strided_slice %330 {offsets = [0, 0], sizes = [2, 32], strides = [1, 1]} : vector<2x128xf32> to vector<2x32xf32>
    %332 = vector.extract_strided_slice %330 {offsets = [0, 32], sizes = [2, 32], strides = [1, 1]} : vector<2x128xf32> to vector<2x32xf32>
    %333 = vector.extract_strided_slice %330 {offsets = [0, 64], sizes = [2, 32], strides = [1, 1]} : vector<2x128xf32> to vector<2x32xf32>
    %334 = vector.extract_strided_slice %330 {offsets = [0, 96], sizes = [2, 32], strides = [1, 1]} : vector<2x128xf32> to vector<2x32xf32>
    %335 = arith.mulf %332, %292 : vector<2x32xf32>
    %336 = arith.mulf %331, %333 : vector<2x32xf32>
    %337 = arith.addf %335, %336 : vector<2x32xf32>
    %338 = math.tanh %337 : vector<2x32xf32>
    %339 = arith.mulf %334, %338 : vector<2x32xf32>
    %340 = tpu.concatenate %339, %309 in 1 : vector<2x32xf32>, vector<2x32xf32> -> vector<2x64xf32>
    %cst_54 = arith.constant dense<0.000000e+00> : vector<2x128xf32>
    %341 = tpu.matmul %340, %2, %cst_54 {dimension_numbers = #tpu.dot_dimension_numbers<[1], [0], [0], [1], [0, 0, 1, 1], [], []>} : vector<2x64xf32>, vector<64x128xf32>, vector<2x128xf32> -> vector<2x128xf32>
    %342 = arith.addf %341, %8 : vector<2x128xf32>
    %343 = math.tanh %342 : vector<2x128xf32>
    %344 = arith.mulf %343, %19 : vector<2x128xf32>
    %345 = arith.addf %344, %21 : vector<2x128xf32>
    %346 = vector.extract_strided_slice %345 {offsets = [0, 0], sizes = [2, 32], strides = [1, 1]} : vector<2x128xf32> to vector<2x32xf32>
    %347 = vector.extract_strided_slice %345 {offsets = [0, 32], sizes = [2, 32], strides = [1, 1]} : vector<2x128xf32> to vector<2x32xf32>
    %348 = vector.extract_strided_slice %345 {offsets = [0, 64], sizes = [2, 32], strides = [1, 1]} : vector<2x128xf32> to vector<2x32xf32>
    %349 = vector.extract_strided_slice %345 {offsets = [0, 96], sizes = [2, 32], strides = [1, 1]} : vector<2x128xf32> to vector<2x32xf32>
    %350 = arith.mulf %347, %307 : vector<2x32xf32>
    %351 = arith.mulf %346, %348 : vector<2x32xf32>
    %352 = arith.addf %350, %351 : vector<2x32xf32>
    %353 = math.tanh %352 : vector<2x32xf32>
    %354 = arith.mulf %349, %353 : vector<2x32xf32>
    %355 = vector.extract_strided_slice %27 {offsets = [14, 0], sizes = [2, 128], strides = [1, 1]} : vector<16x128xf32> to vector<2x128xf32>
    %cst_55 = arith.constant dense<0.000000e+00> : vector<2x128xf32>
    %356 = tpu.matmul %324, %0, %cst_55 {dimension_numbers = #tpu.dot_dimension_numbers<[1], [0], [0], [1], [0, 0, 1, 1], [], []>} : vector<2x32xf32>, vector<32x128xf32>, vector<2x128xf32> -> vector<2x128xf32>
    %357 = arith.addf %355, %356 : vector<2x128xf32>
    %358 = math.tanh %357 : vector<2x128xf32>
    %359 = arith.mulf %358, %19 : vector<2x128xf32>
    %360 = arith.addf %359, %21 : vector<2x128xf32>
    %361 = vector.extract_strided_slice %360 {offsets = [0, 0], sizes = [2, 32], strides = [1, 1]} : vector<2x128xf32> to vector<2x32xf32>
    %362 = vector.extract_strided_slice %360 {offsets = [0, 32], sizes = [2, 32], strides = [1, 1]} : vector<2x128xf32> to vector<2x32xf32>
    %363 = vector.extract_strided_slice %360 {offsets = [0, 64], sizes = [2, 32], strides = [1, 1]} : vector<2x128xf32> to vector<2x32xf32>
    %364 = vector.extract_strided_slice %360 {offsets = [0, 96], sizes = [2, 32], strides = [1, 1]} : vector<2x128xf32> to vector<2x32xf32>
    %365 = arith.mulf %362, %322 : vector<2x32xf32>
    %366 = arith.mulf %361, %363 : vector<2x32xf32>
    %367 = arith.addf %365, %366 : vector<2x32xf32>
    %368 = math.tanh %367 : vector<2x32xf32>
    %369 = arith.mulf %364, %368 : vector<2x32xf32>
    %370 = tpu.concatenate %369, %339 in 1 : vector<2x32xf32>, vector<2x32xf32> -> vector<2x64xf32>
    %cst_56 = arith.constant dense<0.000000e+00> : vector<2x128xf32>
    %371 = tpu.matmul %370, %1, %cst_56 {dimension_numbers = #tpu.dot_dimension_numbers<[1], [0], [0], [1], [0, 0, 1, 1], [], []>} : vector<2x64xf32>, vector<64x128xf32>, vector<2x128xf32> -> vector<2x128xf32>
    %372 = arith.addf %371, %5 : vector<2x128xf32>
    %373 = math.tanh %372 : vector<2x128xf32>
    %374 = arith.mulf %373, %19 : vector<2x128xf32>
    %375 = arith.addf %374, %21 : vector<2x128xf32>
    %376 = vector.extract_strided_slice %375 {offsets = [0, 0], sizes = [2, 32], strides = [1, 1]} : vector<2x128xf32> to vector<2x32xf32>
    %377 = vector.extract_strided_slice %375 {offsets = [0, 32], sizes = [2, 32], strides = [1, 1]} : vector<2x128xf32> to vector<2x32xf32>
    %378 = vector.extract_strided_slice %375 {offsets = [0, 64], sizes = [2, 32], strides = [1, 1]} : vector<2x128xf32> to vector<2x32xf32>
    %379 = vector.extract_strided_slice %375 {offsets = [0, 96], sizes = [2, 32], strides = [1, 1]} : vector<2x128xf32> to vector<2x32xf32>
    %380 = arith.mulf %377, %337 : vector<2x32xf32>
    %381 = arith.mulf %376, %378 : vector<2x32xf32>
    %382 = arith.addf %380, %381 : vector<2x32xf32>
    %383 = math.tanh %382 : vector<2x32xf32>
    %384 = arith.mulf %379, %383 : vector<2x32xf32>
    %385 = tpu.concatenate %384, %354 in 1 : vector<2x32xf32>, vector<2x32xf32> -> vector<2x64xf32>
    %cst_57 = arith.constant dense<0.000000e+00> : vector<2x128xf32>
    %386 = tpu.matmul %385, %2, %cst_57 {dimension_numbers = #tpu.dot_dimension_numbers<[1], [0], [0], [1], [0, 0, 1, 1], [], []>} : vector<2x64xf32>, vector<64x128xf32>, vector<2x128xf32> -> vector<2x128xf32>
    %387 = arith.addf %386, %8 : vector<2x128xf32>
    %388 = math.tanh %387 : vector<2x128xf32>
    %389 = arith.mulf %388, %19 : vector<2x128xf32>
    %390 = arith.addf %389, %21 : vector<2x128xf32>
    %391 = vector.extract_strided_slice %390 {offsets = [0, 0], sizes = [2, 32], strides = [1, 1]} : vector<2x128xf32> to vector<2x32xf32>
    %392 = vector.extract_strided_slice %390 {offsets = [0, 32], sizes = [2, 32], strides = [1, 1]} : vector<2x128xf32> to vector<2x32xf32>
    %393 = vector.extract_strided_slice %390 {offsets = [0, 64], sizes = [2, 32], strides = [1, 1]} : vector<2x128xf32> to vector<2x32xf32>
    %394 = vector.extract_strided_slice %390 {offsets = [0, 96], sizes = [2, 32], strides = [1, 1]} : vector<2x128xf32> to vector<2x32xf32>
    %395 = arith.mulf %392, %352 : vector<2x32xf32>
    %396 = arith.mulf %391, %393 : vector<2x32xf32>
    %397 = arith.addf %395, %396 : vector<2x32xf32>
    %398 = math.tanh %397 : vector<2x32xf32>
    %399 = arith.mulf %394, %398 : vector<2x32xf32>
    %400 = tpu.concatenate %84, %129, %174, %219, %264, %309, %354, %399 in 0 : vector<2x32xf32>, vector<2x32xf32>, vector<2x32xf32>, vector<2x32xf32>, vector<2x32xf32>, vector<2x32xf32>, vector<2x32xf32>, vector<2x32xf32> -> vector<16x32xf32>
    %c0_58 = arith.constant 0 : index
    %c0_59 = arith.constant 0 : index
    %c0_60 = arith.constant 0 : index
    %401 = vector.load %arg15[%c0_58, %c0_59, %c0_60] : memref<3x2x32xf32, #tpu.memory_space<vmem>>, vector<1x2x32xf32>
    %402 = vector.shape_cast %401 : vector<1x2x32xf32> to vector<2x32xf32>
    %403 = vector.shape_cast %369 : vector<2x32xf32> to vector<1x2x32xf32>
    tpu.vector_store %arg15[%c0_58, %c0_59, %c0_60], %403 {strides = array<i32>} : memref<3x2x32xf32, #tpu.memory_space<vmem>>, vector<1x2x32xf32>,
    %c0_61 = arith.constant 0 : index
    %c0_62 = arith.constant 0 : index
    %c0_63 = arith.constant 0 : index
    %404 = vector.load %arg16[%c0_61, %c0_62, %c0_63] : memref<3x2x32xf32, #tpu.memory_space<vmem>>, vector<1x2x32xf32>
    %405 = vector.shape_cast %404 : vector<1x2x32xf32> to vector<2x32xf32>
    %406 = vector.shape_cast %367 : vector<2x32xf32> to vector<1x2x32xf32>
    tpu.vector_store %arg16[%c0_61, %c0_62, %c0_63], %406 {strides = array<i32>} : memref<3x2x32xf32, #tpu.memory_space<vmem>>, vector<1x2x32xf32>,
    %c1_64 = arith.constant 1 : index
    %c0_65 = arith.constant 0 : index
    %c0_66 = arith.constant 0 : index
    %407 = vector.load %arg15[%c1_64, %c0_65, %c0_66] : memref<3x2x32xf32, #tpu.memory_space<vmem>>, vector<1x2x32xf32>
    %408 = vector.shape_cast %407 : vector<1x2x32xf32> to vector<2x32xf32>
    %409 = vector.shape_cast %384 : vector<2x32xf32> to vector<1x2x32xf32>
    tpu.vector_store %arg15[%c1_64, %c0_65, %c0_66], %409 {strides = array<i32>} : memref<3x2x32xf32, #tpu.memory_space<vmem>>, vector<1x2x32xf32>,
    %c1_67 = arith.constant 1 : index
    %c0_68 = arith.constant 0 : index
    %c0_69 = arith.constant 0 : index
    %410 = vector.load %arg16[%c1_67, %c0_68, %c0_69] : memref<3x2x32xf32, #tpu.memory_space<vmem>>, vector<1x2x32xf32>
    %411 = vector.shape_cast %410 : vector<1x2x32xf32> to vector<2x32xf32>
    %412 = vector.shape_cast %382 : vector<2x32xf32> to vector<1x2x32xf32>
    tpu.vector_store %arg16[%c1_67, %c0_68, %c0_69], %412 {strides = array<i32>} : memref<3x2x32xf32, #tpu.memory_space<vmem>>, vector<1x2x32xf32>,
    %c2_70 = arith.constant 2 : index
    %c0_71 = arith.constant 0 : index
    %c0_72 = arith.constant 0 : index
    %413 = vector.load %arg15[%c2_70, %c0_71, %c0_72] : memref<3x2x32xf32, #tpu.memory_space<vmem>>, vector<1x2x32xf32>
    %414 = vector.shape_cast %413 : vector<1x2x32xf32> to vector<2x32xf32>
    %415 = vector.shape_cast %399 : vector<2x32xf32> to vector<1x2x32xf32>
    tpu.vector_store %arg15[%c2_70, %c0_71, %c0_72], %415 {strides = array<i32>} : memref<3x2x32xf32, #tpu.memory_space<vmem>>, vector<1x2x32xf32>,
    %c2_73 = arith.constant 2 : index
    %c0_74 = arith.constant 0 : index
    %c0_75 = arith.constant 0 : index
    %416 = vector.load %arg16[%c2_73, %c0_74, %c0_75] : memref<3x2x32xf32, #tpu.memory_space<vmem>>, vector<1x2x32xf32>
    %417 = vector.shape_cast %416 : vector<1x2x32xf32> to vector<2x32xf32>
    %418 = vector.shape_cast %397 : vector<2x32xf32> to vector<1x2x32xf32>
    tpu.vector_store %arg16[%c2_73, %c0_74, %c0_75], %418 {strides = array<i32>} : memref<3x2x32xf32, #tpu.memory_space<vmem>>, vector<1x2x32xf32>,
    %c0_76 = arith.constant 0 : index
    %c0_77 = arith.constant 0 : index
    %419 = vector.load %arg10[%c0_76, %c0_77] : memref<32x32xf32, #tpu.memory_space<vmem>>, vector<32x32xf32>
    %cst_78 = arith.constant dense<0.000000e+00> : vector<16x32xf32>
    %420 = tpu.matmul %400, %419, %cst_78 {dimension_numbers = #tpu.dot_dimension_numbers<[1], [0], [0], [1], [0, 0, 1, 1], [], []>} : vector<16x32xf32>, vector<32x32xf32>, vector<16x32xf32> -> vector<16x32xf32>
    %c0_79 = arith.constant 0 : index
    %c0_80 = arith.constant 0 : index
    %421 = vector.load %arg11[%c0_79, %c0_80] : memref<1x32xf32, #tpu.memory_space<vmem>>, vector<1x32xf32>
    %422 = vector.broadcast %421 : vector<1x32xf32> to vector<16x32xf32>
    %423 = arith.addf %420, %422 : vector<16x32xf32>
    %cst_81 = arith.constant 0.000000e+00 : f32
    %424 = vector.broadcast %cst_81 : f32 to vector<16x32xf32>
    %425 = arith.maximumf %423, %424 : vector<16x32xf32>
    %c0_82 = arith.constant 0 : index
    %c0_83 = arith.constant 0 : index
    %426 = vector.load %arg12[%c0_82, %c0_83] : memref<32x4xf32, #tpu.memory_space<vmem>>, vector<32x4xf32>
    %cst_84 = arith.constant dense<0.000000e+00> : vector<16x4xf32>
    %427 = tpu.matmul %425, %426, %cst_84 {dimension_numbers = #tpu.dot_dimension_numbers<[1], [0], [0], [1], [0, 0, 1, 1], [], []>} : vector<16x32xf32>, vector<32x4xf32>, vector<16x4xf32> -> vector<16x4xf32>
    %c0_85 = arith.constant 0 : index
    %c0_86 = arith.constant 0 : index
    %428 = vector.load %arg13[%c0_85, %c0_86] : memref<1x4xf32, #tpu.memory_space<vmem>>, vector<1x4xf32>
    %429 = vector.broadcast %428 : vector<1x4xf32> to vector<16x4xf32>
    %430 = arith.addf %427, %429 : vector<16x4xf32>
    %431 = math.tanh %430 : vector<16x4xf32>
    %c0_87 = arith.constant 0 : index
    %c0_88 = arith.constant 0 : index
    %432 = vector.load %arg14[%c0_87, %c0_88] : memref<16x4xf32, #tpu.memory_space<vmem>>, vector<16x4xf32>
    tpu.vector_store %arg14[%c0_87, %c0_88], %431 {strides = array<i32>} : memref<16x4xf32, #tpu.memory_space<vmem>>, vector<16x4xf32>,
    return
  }
}

</mosaic_0001>

<llo_original>
// kernel: lstm_generator_forward.1
$region0: #{lstm_generator_forward.1}
  #allocation0 [shape = 'u32[]', space=smem, size = 0x4, offset = 0x4, fixed_abs, tag = 'smem constant byte address 0x4 - core index']
  #allocation1 [shape = 'u32[72,128]{1,0:T(1,128)}', space=vmem, size = 0x9000, scoped, tag = 'internal scratch']
  %s0 = inlined_call_operand.vmem [shape: f32[16,8], index: 0, kind: input, shape index: {}]
  %s1 = inlined_call_operand.vmem [shape: f32[3,2,32], index: 1, kind: input, shape index: {}, may-alias: {1,2}]
  %s2 = inlined_call_operand.vmem [shape: f32[3,2,32], index: 2, kind: input, shape index: {}, may-alias: {1,2}]
  %s3 = inlined_call_operand.vmem [shape: f32[8,128], index: 3, kind: input, shape index: {}]
  %s4 = inlined_call_operand.hbm [shape: f32[32,128], index: 4, kind: input, shape index: {}]
  %s5 = inlined_call_operand.hbm [shape: f32[1,128], index: 5, kind: input, shape index: {}]
  %s6 = inlined_call_operand.vmem [shape: f32[64,128], index: 6, kind: input, shape index: {}]
  %s7 = inlined_call_operand.vmem [shape: f32[1,128], index: 7, kind: input, shape index: {}]
  %s8 = inlined_call_operand.hbm [shape: f32[64,128], index: 8, kind: input, shape index: {}]
  %s9 = inlined_call_operand.vmem [shape: f32[1,128], index: 9, kind: input, shape index: {}]
  %s10 = inlined_call_operand.hbm [shape: f32[32,32], index: 10, kind: input, shape index: {}]
  %s11 = inlined_call_operand.hbm [shape: f32[1,32], index: 11, kind: input, shape index: {}]
  %s12 = inlined_call_operand.vmem [shape: f32[32,4], index: 12, kind: input, shape index: {}]
  %s13 = inlined_call_operand.hbm [shape: f32[1,4], index: 13, kind: input, shape index: {}]
  %s14 = inlined_call_operand.vmem [shape: f32[16,4], index: 14, kind: output, shape index: {0}]
  %s15 = inlined_call_operand.hbm [shape: f32[3,2,32], index: 15, kind: output, shape index: {1}]
  %s16 = inlined_call_operand.hbm [shape: f32[3,2,32], index: 16, kind: output, shape index: {2}]
  %17 = xla_tuple %s14, %s15, %s16
  %s18 = sld [smem:[#allocation0]]
  $region106: #{lstm_generator_forward.1} parent=0
    _
  %s20 = ssub.s32 1, %s18
  %s21 = scalar_select 0, %s20, %s18
  $region1: #{lstm_generator_forward.1} parent=0
    #allocation2 [shape = 'u8[16384]{0}', space=vmem, size = 0x4000, scoped, tag = 'input window, operand 4, single buffered']
    #allocation3 [shape = 's32[1]{0}', space=sflag, size = 0x4, scoped, tag = 'scoped memory for lstm_generator_forward.1']
    #allocation4 [shape = 's32[1]{0}', space=sflag, size = 0x4, scoped, tag = 'scoped memory for lstm_generator_forward.1']
    #allocation5 [shape = 'u8[512]{0}', space=vmem, size = 0x400, scoped, tag = 'input window, operand 5, single buffered']
    #allocation6 [shape = 's32[1]{0}', space=sflag, size = 0x4, scoped, tag = 'scoped memory for lstm_generator_forward.1']
    #allocation7 [shape = 'u8[32768]{0}', space=vmem, size = 0x8000, scoped, tag = 'input window, operand 8, single buffered']
    #allocation8 [shape = 'u8[16384]{0}', space=vmem, size = 0x4000, scoped, tag = 'input window, operand 10, single buffered']
    #allocation9 [shape = 's32[1]{0}', space=sflag, size = 0x4, scoped, tag = 'scoped memory for lstm_generator_forward.1']
    #allocation10 [shape = 'u8[512]{0}', space=vmem, size = 0x400, scoped, tag = 'input window, operand 11, single buffered']
    #allocation11 [shape = 'u8[512]{0}', space=vmem, size = 0x400, scoped, tag = 'input window, operand 13, single buffered']
    #allocation12 [shape = 's32[1]{0}', space=sflag, size = 0x4, scoped, tag = 'scoped memory for lstm_generator_forward.1']
    #allocation13 [shape = 'u8[3072]{0}', space=vmem, size = 0xc00, scoped, tag = 'output window, operand 1, single buffered']
    #allocation14 [shape = 'u8[3072]{0}', space=vmem, size = 0xc00, scoped, tag = 'output window, operand 2, single buffered']
    #allocation15 [shape = 's32[1]{0}', space=sflag, size = 0x4, scoped, tag = 'scoped memory for lstm_generator_forward.1']
    %22 = vsyncpa [#allocation3], 0
    %23 = vsyncpa [#allocation6], 0
    %24 = vsyncpa [#allocation9], 0
    %25 = vsyncpa [#allocation12], 0
    %26 = vsyncpa [#allocation4], 0
    %27 = vsyncpa [#allocation15], 0
    // Predicated region
    $region2: #{lstm_generator_forward.1} parent=1 // pred_check
      _
    $region3: #{lstm_generator_forward.1} parent=1 // pred_check_branch
      %29 = sbr.rel (0) target = $region5
    $region4: #{lstm_generator_forward.1} parent=1 // pred_region
      _
    $region5: #{lstm_generator_forward.1} parent=1 // pred_fallthru
      _
    // Predicated region
    $region6: #{lstm_generator_forward.1} parent=1 // pred_check
      _
    $region7: #{lstm_generator_forward.1} parent=1 // pred_check_branch
      %31 = sbr.rel (0) target = $region9
    $region8: #{lstm_generator_forward.1} parent=1 // pred_region
      _
    $region9: #{lstm_generator_forward.1} parent=1 // pred_fallthru
      _
    // Predicated region
    $region10: #{lstm_generator_forward.1} parent=1 // pred_check
      _
    $region11: #{lstm_generator_forward.1} parent=1 // pred_check_branch
      %33 = sbr.rel (0) target = $region13
    $region12: #{lstm_generator_forward.1} parent=1 // pred_region
      _
    $region13: #{lstm_generator_forward.1} parent=1 // pred_fallthru
      _
    // Predicated region
    $region14: #{lstm_generator_forward.1} parent=1 // pred_check
      _
    $region15: #{lstm_generator_forward.1} parent=1 // pred_check_branch
      %35 = sbr.rel (0) target = $region17
    $region16: #{lstm_generator_forward.1} parent=1 // pred_region
      _
    $region17: #{lstm_generator_forward.1} parent=1 // pred_fallthru
      _
    // Predicated region
    $region18: #{lstm_generator_forward.1} parent=1 // pred_check
      _
    $region19: #{lstm_generator_forward.1} parent=1 // pred_check_branch
      %37 = sbr.rel (0) target = $region21
    $region20: #{lstm_generator_forward.1} parent=1 // pred_region
      %39 = vsyncadd [#allocation3], 0
      %s40 = sshll.u32 %s4, 4
      %s41 = int_to_ptr.hbm [resolvable:$true] %s40
      %s42 = sshll.u32 [#allocation2], 4
      %s43 = int_to_ptr.vmem [resolvable:$true] %s42
      %48 = dma.hbm_to_vmem [thread:$0]  %s41, 512, %s43, [#allocation3], 128, 128, 8
    $region21: #{lstm_generator_forward.1} parent=1 // pred_fallthru
      _
    // Predicated region
    $region22: #{lstm_generator_forward.1} parent=1 // pred_check
      _
    $region23: #{lstm_generator_forward.1} parent=1 // pred_check_branch
      %50 = sbr.rel (0) target = $region25
    $region24: #{lstm_generator_forward.1} parent=1 // pred_region
      %52 = vsyncadd [#allocation6], 0
      %s54 = sshll.u32 %s5, 4
      %s55 = int_to_ptr.hbm [resolvable:$true] %s54
      %s56 = sshll.u32 [#allocation5], 4
      %s57 = int_to_ptr.vmem [resolvable:$true] %s56
      %59 = dma.hbm_to_vmem [thread:$0]  %s55, 16, %s57, [#allocation6]
    $region25: #{lstm_generator_forward.1} parent=1 // pred_fallthru
      _
    // Predicated region
    $region26: #{lstm_generator_forward.1} parent=1 // pred_check
      _
    $region27: #{lstm_generator_forward.1} parent=1 // pred_check_branch
      %61 = sbr.rel (0) target = $region29
    $region28: #{lstm_generator_forward.1} parent=1 // pred_region
      _
    $region29: #{lstm_generator_forward.1} parent=1 // pred_fallthru
      _
    // Predicated region
    $region30: #{lstm_generator_forward.1} parent=1 // pred_check
      _
    $region31: #{lstm_generator_forward.1} parent=1 // pred_check_branch
      %63 = sbr.rel (0) target = $region33
    $region32: #{lstm_generator_forward.1} parent=1 // pred_region
      _
    $region33: #{lstm_generator_forward.1} parent=1 // pred_fallthru
      _
    // Predicated region
    $region34: #{lstm_generator_forward.1} parent=1 // pred_check
      _
    $region35: #{lstm_generator_forward.1} parent=1 // pred_check_branch
      %65 = sbr.rel (0) target = $region37
    $region36: #{lstm_generator_forward.1} parent=1 // pred_region
      %67 = vsyncadd [#allocation6], 0
      %s68 = sshll.u32 %s8, 4
      %s69 = int_to_ptr.hbm [resolvable:$true] %s68
      %s70 = sshll.u32 [#allocation7], 4
      %s71 = int_to_ptr.vmem [resolvable:$true] %s70
      %76 = dma.hbm_to_vmem [thread:$0]  %s69, 1024, %s71, [#allocation6], 128, 128, 8
    $region37: #{lstm_generator_forward.1} parent=1 // pred_fallthru
      _
    // Predicated region
    $region38: #{lstm_generator_forward.1} parent=1 // pred_check
      _
    $region39: #{lstm_generator_forward.1} parent=1 // pred_check_branch
      %78 = sbr.rel (0) target = $region41
    $region40: #{lstm_generator_forward.1} parent=1 // pred_region
      _
    $region41: #{lstm_generator_forward.1} parent=1 // pred_fallthru
      _
    // Predicated region
    $region42: #{lstm_generator_forward.1} parent=1 // pred_check
      _
    $region43: #{lstm_generator_forward.1} parent=1 // pred_check_branch
      %80 = sbr.rel (0) target = $region45
    $region44: #{lstm_generator_forward.1} parent=1 // pred_region
      %82 = vsyncadd [#allocation9], 0
      %s83 = sshll.u32 %s10, 4
      %s84 = int_to_ptr.hbm [resolvable:$true] %s83
      %s85 = sshll.u32 [#allocation8], 4
      %s86 = int_to_ptr.vmem [resolvable:$true] %s85
      %91 = dma.hbm_to_vmem [thread:$0]  %s84, 512, %s86, [#allocation9], 128, 128, 8
    $region45: #{lstm_generator_forward.1} parent=1 // pred_fallthru
      _
    // Predicated region
    $region46: #{lstm_generator_forward.1} parent=1 // pred_check
      _
    $region47: #{lstm_generator_forward.1} parent=1 // pred_check_branch
      %93 = sbr.rel (0) target = $region49
    $region48: #{lstm_generator_forward.1} parent=1 // pred_region
      %95 = vsyncadd [#allocation9], 0
      %s97 = sshll.u32 %s11, 4
      %s98 = int_to_ptr.hbm [resolvable:$true] %s97
      %s99 = sshll.u32 [#allocation10], 4
      %s100 = int_to_ptr.vmem [resolvable:$true] %s99
      %102 = dma.hbm_to_vmem [thread:$0]  %s98, 16, %s100, [#allocation9]
    $region49: #{lstm_generator_forward.1} parent=1 // pred_fallthru
      _
    // Predicated region
    $region50: #{lstm_generator_forward.1} parent=1 // pred_check
      _
    $region51: #{lstm_generator_forward.1} parent=1 // pred_check_branch
      %104 = sbr.rel (0) target = $region53
    $region52: #{lstm_generator_forward.1} parent=1 // pred_region
      _
    $region53: #{lstm_generator_forward.1} parent=1 // pred_fallthru
      _
    // Predicated region
    $region54: #{lstm_generator_forward.1} parent=1 // pred_check
      _
    $region55: #{lstm_generator_forward.1} parent=1 // pred_check_branch
      %106 = sbr.rel (0) target = $region57
    $region56: #{lstm_generator_forward.1} parent=1 // pred_region
      %108 = vsyncadd [#allocation12], 0
      %s110 = sshll.u32 %s13, 4
      %s111 = int_to_ptr.hbm [resolvable:$true] %s110
      %s112 = sshll.u32 [#allocation11], 4
      %s113 = int_to_ptr.vmem [resolvable:$true] %s112
      %115 = dma.hbm_to_vmem [thread:$0]  %s111, 16, %s113, [#allocation12]
    $region57: #{lstm_generator_forward.1} parent=1 // pred_fallthru
      _
    // Predicated region
    $region58: #{lstm_generator_forward.1} parent=1 // pred_check
      _
    $region59: #{lstm_generator_forward.1} parent=1 // pred_check_branch
      %117 = sbr.rel (0) target = $region61
    $region60: #{lstm_generator_forward.1} parent=1 // pred_region
      %119 = dma.done [#allocation3], 512
    $region61: #{lstm_generator_forward.1} parent=1 // pred_fallthru
      _
    // Predicated region
    $region62: #{lstm_generator_forward.1} parent=1 // pred_check
      _
    $region63: #{lstm_generator_forward.1} parent=1 // pred_check_branch
      %121 = sbr.rel (0) target = $region65
    $region64: #{lstm_generator_forward.1} parent=1 // pred_region
      %123 = dma.done [#allocation6], 16
    $region65: #{lstm_generator_forward.1} parent=1 // pred_fallthru
      _
    // Predicated region
    $region66: #{lstm_generator_forward.1} parent=1 // pred_check
      _
    $region67: #{lstm_generator_forward.1} parent=1 // pred_check_branch
      %125 = sbr.rel (0) target = $region69
    $region68: #{lstm_generator_forward.1} parent=1 // pred_region
      %127 = dma.done [#allocation6], 1024
    $region69: #{lstm_generator_forward.1} parent=1 // pred_fallthru
      _
    // Predicated region
    $region70: #{lstm_generator_forward.1} parent=1 // pred_check
      _
    $region71: #{lstm_generator_forward.1} parent=1 // pred_check_branch
      %129 = sbr.rel (0) target = $region73
    $region72: #{lstm_generator_forward.1} parent=1 // pred_region
      %131 = dma.done [#allocation9], 512
    $region73: #{lstm_generator_forward.1} parent=1 // pred_fallthru
      _
    // Predicated region
    $region74: #{lstm_generator_forward.1} parent=1 // pred_check
      _
    $region75: #{lstm_generator_forward.1} parent=1 // pred_check_branch
      %133 = sbr.rel (0) target = $region77
    $region76: #{lstm_generator_forward.1} parent=1 // pred_region
      %135 = dma.done [#allocation9], 16
    $region77: #{lstm_generator_forward.1} parent=1 // pred_fallthru
      _
    // Predicated region
    $region78: #{lstm_generator_forward.1} parent=1 // pred_check
      _
    $region79: #{lstm_generator_forward.1} parent=1 // pred_check_branch
      %137 = sbr.rel (0) target = $region81
    $region80: #{lstm_generator_forward.1} parent=1 // pred_region
      %139 = dma.done [#allocation12], 16
    $region81: #{lstm_generator_forward.1} parent=1 // pred_fallthru
      _
    %v140 = vld [vmem:[#allocation2] sm:$0xff]
    %v141 = vld [vmem:[#allocation2 + $0x8] sm:$0xff]
    %v142 = vld [vmem:[#allocation2 + $0x10] sm:$0xff]
    %v143 = vld [vmem:[#allocation2 + $0x18] sm:$0xff]
    %v144 = vld [vmem:[%s6] sm:$0xff]
    %v145 = vld [vmem:[%s6 + $0x8] sm:$0xff]
    %v146 = vld [vmem:[%s6 + $0x10] sm:$0xff]
    %v147 = vld [vmem:[%s6 + $0x18] sm:$0xff]
    %v148 = vld [vmem:[%s6 + $0x20] sm:$0xff]
    %v149 = vld [vmem:[%s6 + $0x28] sm:$0xff]
    %v150 = vld [vmem:[%s6 + $0x30] sm:$0xff]
    %v151 = vld [vmem:[%s6 + $0x38] sm:$0xff]
    %v152 = vld [vmem:[#allocation7] sm:$0xff]
    %v153 = vld [vmem:[#allocation7 + $0x8] sm:$0xff]
    %v154 = vld [vmem:[#allocation7 + $0x10] sm:$0xff]
    %v155 = vld [vmem:[#allocation7 + $0x18] sm:$0xff]
    %v156 = vld [vmem:[#allocation7 + $0x20] sm:$0xff]
    %v157 = vld [vmem:[#allocation7 + $0x28] sm:$0xff]
    %v158 = vld [vmem:[#allocation7 + $0x30] sm:$0xff]
    %v159 = vld [vmem:[#allocation7 + $0x38] sm:$0xff]
    %v160 = vld [vmem:[%s7] sm:$0x1]
    %v162 = vperm.slane %v160, 0
    %v164 = vld [vmem:[%s9] sm:$0x1]
    %v166 = vperm.slane %v164, 0
    %v168 = vlaneseq
    %v169 = vand.u32 %v168, 127
    %vm170 = vcmp.ge.s32.totalorder %v169, 64
    %vm171 = vcmp.lt.s32.totalorder %v169, 96
    %vm172 = vmand %vm170, %vm171
    %v173 = vsel %vm172, 1.0, 0.5
    %v174 = vsub.f32 1.0, %v173
    %v175 = vld [vmem:[%s0] sm:$0xff]
    %v176 = vld [vmem:[%s0 + $0x8] sm:$0xff]
    %v177 = vld [vmem:[%s3] sm:$0xff]
    %v178 = vld [vmem:[#allocation5] sm:$0x1]
    %v180 = vperm.slane %v178, 0
    %vm182 = vcmask 64512
    %v184 = vsel %vm182, %v175, 0
    %v187 = vsel %vm182, %v176, 0
    %189 = vmatpush.msra.mxu0 0.0
    %190 = vmatpush.msra.mxu0 0.0
    %191 = vmatpush.msra.mxu0 0.0
    %192 = vmatpush.msra.mxu0 0.0
    %193 = vmatpush.msra.mxu0 0.0
    %194 = vmatpush.msra.mxu0 0.0
    %195 = vmatpush.msra.mxu0 0.0
    %196 = vmatpush.msra.mxu0 0.0
    %197 = vmatpush.msra.mxu0 0.0
    %198 = vmatpush.msra.mxu0 0.0
    %199 = vmatpush.msra.mxu0 0.0
    %200 = vmatpush.msra.mxu0 0.0
    %201 = vmatpush.msra.mxu0 0.0
    %202 = vmatpush.msra.mxu0 0.0
    %203 = vmatpush.msra.mxu0 0.0
    %204 = vmatpush.msra.mxu0 %v177
    %205 = vmatmul.f32.gmra.mxu0 %v184
    %v206 = vpop.f32.mrf.mxu0
    %v207 = vadd.f32 %v180, %v206
    %208 = vmatmul.f32.gmra.mxu0 %v187
    %v209 = vpop.f32.mrf.mxu0
    %v210 = vadd.f32 %v180, %v209
    %211 = vdwg.mxu0
    %v212 = vld [vmem:[%s1] sm:$0x3]
    %s213 = scalar_lea.vmem %s1, 2
    %v214 = vld [vmem:[%s213] sm:$0x3]
    %s215 = scalar_lea.vmem %s1, 4
    %v216 = vld [vmem:[%s215] sm:$0x3]
    %v217 = vld [vmem:[%s2] sm:$0x3]
    %s218 = scalar_lea.vmem %s2, 2
    %v219 = vld [vmem:[%s218] sm:$0x3]
    %s220 = scalar_lea.vmem %s2, 4
    %v221 = vld [vmem:[%s220] sm:$0x3]
    %vm222 = vcmask 261120
    %v224 = vsel %vm222, %v212, 0
    %226 = vmatpush.msra.mxu0 0.0
    %227 = vmatpush.msra.mxu0 0.0
    %228 = vmatpush.msra.mxu0 0.0
    %229 = vmatpush.msra.mxu0 0.0
    %230 = vmatpush.msra.mxu0 0.0
    %231 = vmatpush.msra.mxu0 0.0
    %232 = vmatpush.msra.mxu0 0.0
    %233 = vmatpush.msra.mxu0 0.0
    %234 = vmatpush.msra.mxu0 0.0
    %235 = vmatpush.msra.mxu0 0.0
    %236 = vmatpush.msra.mxu0 0.0
    %237 = vmatpush.msra.mxu0 0.0
    %238 = vmatpush.msra.mxu0 %v143
    %239 = vmatpush.msra.mxu0 %v142
    %240 = vmatpush.msra.mxu0 %v141
    %241 = vmatpush.msra.mxu0 %v140
    %242 = vmatmul.f32.gmra.mxu0 %v224
    %v243 = vpop.f32.mrf.mxu0
    %v244 = vadd.f32 0.0, %v243
    %245 = vdwg.mxu0
    %v246 = vadd.f32 %v207, %v244
    %v247 = vtanh.pop %v246
    %v248 = vmul.f32 %v247, %v173
    %v249 = vadd.f32 %v248, %v174
    %251 = vrot.lane.b32.xlu0 %v217, 32
    %v252 = vpop.permute.xlu0 %251
    %v254 = vmul.f32 %v249, %v252
    %256 = vrot.lane.b32.xlu0 %v249, 64
    %v257 = vpop.permute.xlu0 %256
    %v259 = vmul.f32 %v249, %v257
    %261 = vrot.lane.b32.xlu0 %v259, 32
    %v262 = vpop.permute.xlu0 %261
    %v264 = vadd.f32 %v254, %v262
    %v265 = vtanh.pop %v264
    %267 = vrot.lane.b32.xlu0 %v265, 64
    %v268 = vpop.permute.xlu0 %267
    %v270 = vmul.f32 %v249, %v268
    %272 = vrot.lane.b32.xlu0 %v270, 32
    %v273 = vpop.permute.xlu0 %272
    %276 = vrot.lane.b32.xlu0 %v214, 32
    %v277 = vpop.permute.xlu0 %276
    %v279 = vsel %vm222, %v273, %v277
    %vm280 = vcmask 523264
    %v282 = vsel %vm280, %v279, 0
    %284 = vmatpush.msra.mxu0 0.0
    %285 = vmatpush.msra.mxu0 0.0
    %286 = vmatpush.msra.mxu0 0.0
    %287 = vmatpush.msra.mxu0 0.0
    %288 = vmatpush.msra.mxu0 0.0
    %289 = vmatpush.msra.mxu0 0.0
    %290 = vmatpush.msra.mxu0 0.0
    %291 = vmatpush.msra.mxu0 0.0
    %292 = vmatpush.msra.mxu0 %v151
    %293 = vmatpush.msra.mxu0 %v150
    %294 = vmatpush.msra.mxu0 %v149
    %295 = vmatpush.msra.mxu0 %v148
    %296 = vmatpush.msra.mxu0 %v147
    %297 = vmatpush.msra.mxu0 %v146
    %298 = vmatpush.msra.mxu0 %v145
    %299 = vmatpush.msra.mxu0 %v144
    %300 = vmatmul.f32.gmra.mxu0 %v282
    %v301 = vpop.f32.mrf.mxu0
    %v302 = vadd.f32 %v162, %v301
    %303 = vdwg.mxu0
    %v304 = vtanh.pop %v302
    %v305 = vmul.f32 %v304, %v173
    %v306 = vadd.f32 %v305, %v174
    %308 = vrot.lane.b32.xlu0 %v219, 32
    %v309 = vpop.permute.xlu0 %308
    %v311 = vmul.f32 %v306, %v309
    %313 = vrot.lane.b32.xlu0 %v306, 64
    %v314 = vpop.permute.xlu0 %313
    %v316 = vmul.f32 %v306, %v314
    %318 = vrot.lane.b32.xlu0 %v316, 32
    %v319 = vpop.permute.xlu0 %318
    %v321 = vadd.f32 %v311, %v319
    %v322 = vtanh.pop %v321
    %324 = vrot.lane.b32.xlu0 %v322, 64
    %v325 = vpop.permute.xlu0 %324
    %v327 = vmul.f32 %v306, %v325
    %329 = vrot.lane.b32.xlu0 %v327, 32
    %v330 = vpop.permute.xlu0 %329
    %333 = vrot.lane.b32.xlu0 %v216, 32
    %v334 = vpop.permute.xlu0 %333
    %v336 = vsel %vm222, %v330, %v334
    %v338 = vsel %vm280, %v336, 0
    %340 = vmatpush.msra.mxu0 0.0
    %341 = vmatpush.msra.mxu0 0.0
    %342 = vmatpush.msra.mxu0 0.0
    %343 = vmatpush.msra.mxu0 0.0
    %344 = vmatpush.msra.mxu0 0.0
    %345 = vmatpush.msra.mxu0 0.0
    %346 = vmatpush.msra.mxu0 0.0
    %347 = vmatpush.msra.mxu0 0.0
    %348 = vmatpush.msra.mxu0 %v159
    %349 = vmatpush.msra.mxu0 %v158
    %350 = vmatpush.msra.mxu0 %v157
    %351 = vmatpush.msra.mxu0 %v156
    %352 = vmatpush.msra.mxu0 %v155
    %353 = vmatpush.msra.mxu0 %v154
    %354 = vmatpush.msra.mxu0 %v153
    %355 = vmatpush.msra.mxu0 %v152
    %356 = vmatmul.f32.gmra.mxu0 %v338
    %v357 = vpop.f32.mrf.mxu0
    %v358 = vadd.f32 %v166, %v357
    %359 = vdwg.mxu0
    %v360 = vtanh.pop %v358
    %v361 = vmul.f32 %v360, %v173
    %v362 = vadd.f32 %v361, %v174
    %364 = vrot.lane.b32.xlu0 %v221, 32
    %v365 = vpop.permute.xlu0 %364
    %v367 = vmul.f32 %v362, %v365
    %369 = vrot.lane.b32.xlu0 %v362, 64
    %v370 = vpop.permute.xlu0 %369
    %v372 = vmul.f32 %v362, %v370
    %374 = vrot.lane.b32.xlu0 %v372, 32
    %v375 = vpop.permute.xlu0 %374
    %v377 = vadd.f32 %v367, %v375
    %v378 = vtanh.pop %v377
    %380 = vrot.lane.b32.xlu0 %v378, 64
    %v381 = vpop.permute.xlu0 %380
    %v383 = vmul.f32 %v362, %v381
    %v384 = vsel %vm222, %v273, 0
    %386 = vmatpush.msra.mxu0 0.0
    %387 = vmatpush.msra.mxu0 0.0
    %388 = vmatpush.msra.mxu0 0.0
    %389 = vmatpush.msra.mxu0 0.0
    %390 = vmatpush.msra.mxu0 0.0
    %391 = vmatpush.msra.mxu0 0.0
    %392 = vmatpush.msra.mxu0 0.0
    %393 = vmatpush.msra.mxu0 0.0
    %394 = vmatpush.msra.mxu0 0.0
    %395 = vmatpush.msra.mxu0 0.0
    %396 = vmatpush.msra.mxu0 0.0
    %397 = vmatpush.msra.mxu0 0.0
    %398 = vmatpush.msra.mxu0 %v143
    %399 = vmatpush.msra.mxu0 %v142
    %400 = vmatpush.msra.mxu0 %v141
    %401 = vmatpush.msra.mxu0 %v140
    %402 = vmatmul.f32.gmra.mxu0 %v384
    %v403 = vpop.f32.mrf.mxu0
    %v404 = vadd.f32 0.0, %v403
    %405 = vdwg.mxu0
    %v407 = vrot.slane %v404, 6
    %v409 = vadd.f32 %v207, %v407
    %v410 = vtanh.pop %v409
    %v411 = vmul.f32 %v410, %v173
    %v412 = vadd.f32 %v411, %v174
    %v414 = vrot.slane %v264, 6
    %v416 = vmul.f32 %v412, %v414
    %418 = vrot.lane.b32.xlu0 %v412, 64
    %v419 = vpop.permute.xlu0 %418
    %v421 = vmul.f32 %v412, %v419
    %423 = vrot.lane.b32.xlu0 %v421, 32
    %v424 = vpop.permute.xlu0 %423
    %v426 = vadd.f32 %v416, %v424
    %v427 = vtanh.pop %v426
    %429 = vrot.lane.b32.xlu0 %v427, 64
    %v430 = vpop.permute.xlu0 %429
    %v432 = vmul.f32 %v412, %v430
    %434 = vrot.lane.b32.xlu0 %v432, 32
    %v435 = vpop.permute.xlu0 %434
    %v437 = vrot.slane %v327, 6
    %438 = vrot.lane.b32.xlu0 %v437, 64
    %v439 = vpop.permute.xlu0 %438
    %v441 = vsel %vm222, %v435, %v439
    %v443 = vrot.slane %v441, 2
    %v444 = vsel %vm280, %v443, 0
    %446 = vmatpush.msra.mxu0 0.0
    %447 = vmatpush.msra.mxu0 0.0
    %448 = vmatpush.msra.mxu0 0.0
    %449 = vmatpush.msra.mxu0 0.0
    %450 = vmatpush.msra.mxu0 0.0
    %451 = vmatpush.msra.mxu0 0.0
    %452 = vmatpush.msra.mxu0 0.0
    %453 = vmatpush.msra.mxu0 0.0
    %454 = vmatpush.msra.mxu0 %v151
    %455 = vmatpush.msra.mxu0 %v150
    %456 = vmatpush.msra.mxu0 %v149
    %457 = vmatpush.msra.mxu0 %v148
    %458 = vmatpush.msra.mxu0 %v147
    %459 = vmatpush.msra.mxu0 %v146
    %460 = vmatpush.msra.mxu0 %v145
    %461 = vmatpush.msra.mxu0 %v144
    %462 = vmatmul.f32.gmra.mxu0 %v444
    %v463 = vpop.f32.mrf.mxu0
    %v464 = vadd.f32 %v162, %v463
    %465 = vdwg.mxu0
    %v466 = vtanh.pop %v464
    %v467 = vmul.f32 %v466, %v173
    %v468 = vadd.f32 %v467, %v174
    %v469 = vmul.f32 %v468, %v321
    %471 = vrot.lane.b32.xlu0 %v468, 64
    %v472 = vpop.permute.xlu0 %471
    %v474 = vmul.f32 %v468, %v472
    %476 = vrot.lane.b32.xlu0 %v474, 32
    %v477 = vpop.permute.xlu0 %476
    %v479 = vadd.f32 %v469, %v477
    %v480 = vtanh.pop %v479
    %482 = vrot.lane.b32.xlu0 %v480, 64
    %v483 = vpop.permute.xlu0 %482
    %v485 = vmul.f32 %v468, %v483
    %487 = vrot.lane.b32.xlu0 %v485, 32
    %v488 = vpop.permute.xlu0 %487
    %491 = vrot.lane.b32.xlu0 %v383, 64
    %v492 = vpop.permute.xlu0 %491
    %v494 = vsel %vm222, %v488, %v492
    %v496 = vsel %vm280, %v494, 0
    %498 = vmatpush.msra.mxu0 0.0
    %499 = vmatpush.msra.mxu0 0.0
    %500 = vmatpush.msra.mxu0 0.0
    %501 = vmatpush.msra.mxu0 0.0
    %502 = vmatpush.msra.mxu0 0.0
    %503 = vmatpush.msra.mxu0 0.0
    %504 = vmatpush.msra.mxu0 0.0
    %505 = vmatpush.msra.mxu0 0.0
    %506 = vmatpush.msra.mxu0 %v159
    %507 = vmatpush.msra.mxu0 %v158
    %508 = vmatpush.msra.mxu0 %v157
    %509 = vmatpush.msra.mxu0 %v156
    %510 = vmatpush.msra.mxu0 %v155
    %511 = vmatpush.msra.mxu0 %v154
    %512 = vmatpush.msra.mxu0 %v153
    %513 = vmatpush.msra.mxu0 %v152
    %514 = vmatmul.f32.gmra.mxu0 %v496
    %v515 = vpop.f32.mrf.mxu0
    %v516 = vadd.f32 %v166, %v515
    %517 = vdwg.mxu0
    %v518 = vtanh.pop %v516
    %v519 = vmul.f32 %v518, %v173
    %v520 = vadd.f32 %v519, %v174
    %v521 = vmul.f32 %v520, %v377
    %523 = vrot.lane.b32.xlu0 %v520, 64
    %v524 = vpop.permute.xlu0 %523
    %v526 = vmul.f32 %v520, %v524
    %528 = vrot.lane.b32.xlu0 %v526, 32
    %v529 = vpop.permute.xlu0 %528
    %v531 = vadd.f32 %v521, %v529
    %v532 = vtanh.pop %v531
    %534 = vrot.lane.b32.xlu0 %v532, 64
    %v535 = vpop.permute.xlu0 %534
    %v537 = vmul.f32 %v520, %v535
    %v538 = vrot.slane %v432, 2
    %539 = vrot.lane.b32.xlu0 %v538, 32
    %v540 = vpop.permute.xlu0 %539
    %v541 = vsel %vm222, %v540, 0
    %543 = vmatpush.msra.mxu0 0.0
    %544 = vmatpush.msra.mxu0 0.0
    %545 = vmatpush.msra.mxu0 0.0
    %546 = vmatpush.msra.mxu0 0.0
    %547 = vmatpush.msra.mxu0 0.0
    %548 = vmatpush.msra.mxu0 0.0
    %549 = vmatpush.msra.mxu0 0.0
    %550 = vmatpush.msra.mxu0 0.0
    %551 = vmatpush.msra.mxu0 0.0
    %552 = vmatpush.msra.mxu0 0.0
    %553 = vmatpush.msra.mxu0 0.0
    %554 = vmatpush.msra.mxu0 0.0
    %555 = vmatpush.msra.mxu0 %v143
    %556 = vmatpush.msra.mxu0 %v142
    %557 = vmatpush.msra.mxu0 %v141
    %558 = vmatpush.msra.mxu0 %v140
    %559 = vmatmul.f32.gmra.mxu0 %v541
    %v560 = vpop.f32.mrf.mxu0
    %v561 = vadd.f32 0.0, %v560
    %562 = vdwg.mxu0
    %v564 = vrot.slane %v561, 4
    %v566 = vadd.f32 %v207, %v564
    %v567 = vtanh.pop %v566
    %v568 = vmul.f32 %v567, %v173
    %v569 = vadd.f32 %v568, %v174
    %v571 = vrot.slane %v426, 6
    %v573 = vmul.f32 %v569, %v571
    %575 = vrot.lane.b32.xlu0 %v569, 64
    %v576 = vpop.permute.xlu0 %575
    %v578 = vmul.f32 %v569, %v576
    %580 = vrot.lane.b32.xlu0 %v578, 32
    %v581 = vpop.permute.xlu0 %580
    %v583 = vadd.f32 %v573, %v581
    %v584 = vtanh.pop %v583
    %586 = vrot.lane.b32.xlu0 %v584, 64
    %v587 = vpop.permute.xlu0 %586
    %v589 = vmul.f32 %v569, %v587
    %591 = vrot.lane.b32.xlu0 %v589, 32
    %v592 = vpop.permute.xlu0 %591
    %v594 = vrot.slane %v485, 4
    %595 = vrot.lane.b32.xlu0 %v594, 64
    %v596 = vpop.permute.xlu0 %595
    %v598 = vsel %vm222, %v592, %v596
    %v600 = vrot.slane %v598, 4
    %v601 = vsel %vm280, %v600, 0
    %603 = vmatpush.msra.mxu0 0.0
    %604 = vmatpush.msra.mxu0 0.0
    %605 = vmatpush.msra.mxu0 0.0
    %606 = vmatpush.msra.mxu0 0.0
    %607 = vmatpush.msra.mxu0 0.0
    %608 = vmatpush.msra.mxu0 0.0
    %609 = vmatpush.msra.mxu0 0.0
    %610 = vmatpush.msra.mxu0 0.0
    %611 = vmatpush.msra.mxu0 %v151
    %612 = vmatpush.msra.mxu0 %v150
    %613 = vmatpush.msra.mxu0 %v149
    %614 = vmatpush.msra.mxu0 %v148
    %615 = vmatpush.msra.mxu0 %v147
    %616 = vmatpush.msra.mxu0 %v146
    %617 = vmatpush.msra.mxu0 %v145
    %618 = vmatpush.msra.mxu0 %v144
    %619 = vmatmul.f32.gmra.mxu0 %v601
    %v620 = vpop.f32.mrf.mxu0
    %v621 = vadd.f32 %v162, %v620
    %622 = vdwg.mxu0
    %v623 = vtanh.pop %v621
    %v624 = vmul.f32 %v623, %v173
    %v625 = vadd.f32 %v624, %v174
    %v626 = vmul.f32 %v625, %v479
    %628 = vrot.lane.b32.xlu0 %v625, 64
    %v629 = vpop.permute.xlu0 %628
    %v631 = vmul.f32 %v625, %v629
    %633 = vrot.lane.b32.xlu0 %v631, 32
    %v634 = vpop.permute.xlu0 %633
    %v636 = vadd.f32 %v626, %v634
    %v637 = vtanh.pop %v636
    %639 = vrot.lane.b32.xlu0 %v637, 64
    %v640 = vpop.permute.xlu0 %639
    %v642 = vmul.f32 %v625, %v640
    %644 = vrot.lane.b32.xlu0 %v642, 32
    %v645 = vpop.permute.xlu0 %644
    %648 = vrot.lane.b32.xlu0 %v537, 64
    %v649 = vpop.permute.xlu0 %648
    %v651 = vsel %vm222, %v645, %v649
    %v653 = vsel %vm280, %v651, 0
    %655 = vmatpush.msra.mxu0 0.0
    %656 = vmatpush.msra.mxu0 0.0
    %657 = vmatpush.msra.mxu0 0.0
    %658 = vmatpush.msra.mxu0 0.0
    %659 = vmatpush.msra.mxu0 0.0
    %660 = vmatpush.msra.mxu0 0.0
    %661 = vmatpush.msra.mxu0 0.0
    %662 = vmatpush.msra.mxu0 0.0
    %663 = vmatpush.msra.mxu0 %v159
    %664 = vmatpush.msra.mxu0 %v158
    %665 = vmatpush.msra.mxu0 %v157
    %666 = vmatpush.msra.mxu0 %v156
    %667 = vmatpush.msra.mxu0 %v155
    %668 = vmatpush.msra.mxu0 %v154
    %669 = vmatpush.msra.mxu0 %v153
    %670 = vmatpush.msra.mxu0 %v152
    %671 = vmatmul.f32.gmra.mxu0 %v653
    %v672 = vpop.f32.mrf.mxu0
    %v673 = vadd.f32 %v166, %v672
    %674 = vdwg.mxu0
    %v675 = vtanh.pop %v673
    %v676 = vmul.f32 %v675, %v173
    %v677 = vadd.f32 %v676, %v174
    %v678 = vmul.f32 %v677, %v531
    %680 = vrot.lane.b32.xlu0 %v677, 64
    %v681 = vpop.permute.xlu0 %680
    %v683 = vmul.f32 %v677, %v681
    %685 = vrot.lane.b32.xlu0 %v683, 32
    %v686 = vpop.permute.xlu0 %685
    %v688 = vadd.f32 %v678, %v686
    %v689 = vtanh.pop %v688
    %691 = vrot.lane.b32.xlu0 %v689, 64
    %v692 = vpop.permute.xlu0 %691
    %v694 = vmul.f32 %v677, %v692
    %v695 = vrot.slane %v589, 4
    %696 = vrot.lane.b32.xlu0 %v695, 32
    %v697 = vpop.permute.xlu0 %696
    %v698 = vsel %vm222, %v697, 0
    %700 = vmatpush.msra.mxu0 0.0
    %701 = vmatpush.msra.mxu0 0.0
    %702 = vmatpush.msra.mxu0 0.0
    %703 = vmatpush.msra.mxu0 0.0
    %704 = vmatpush.msra.mxu0 0.0
    %705 = vmatpush.msra.mxu0 0.0
    %706 = vmatpush.msra.mxu0 0.0
    %707 = vmatpush.msra.mxu0 0.0
    %708 = vmatpush.msra.mxu0 0.0
    %709 = vmatpush.msra.mxu0 0.0
    %710 = vmatpush.msra.mxu0 0.0
    %711 = vmatpush.msra.mxu0 0.0
    %712 = vmatpush.msra.mxu0 %v143
    %713 = vmatpush.msra.mxu0 %v142
    %714 = vmatpush.msra.mxu0 %v141
    %715 = vmatpush.msra.mxu0 %v140
    %716 = vmatmul.f32.gmra.mxu0 %v698
    %v717 = vpop.f32.mrf.mxu0
    %v718 = vadd.f32 0.0, %v717
    %719 = vdwg.mxu0
    %v721 = vrot.slane %v718, 2
    %v723 = vadd.f32 %v207, %v721
    %v724 = vtanh.pop %v723
    %v725 = vmul.f32 %v724, %v173
    %v726 = vadd.f32 %v725, %v174
    %v728 = vrot.slane %v583, 6
    %v730 = vmul.f32 %v726, %v728
    %732 = vrot.lane.b32.xlu0 %v726, 64
    %v733 = vpop.permute.xlu0 %732
    %v735 = vmul.f32 %v726, %v733
    %737 = vrot.lane.b32.xlu0 %v735, 32
    %v738 = vpop.permute.xlu0 %737
    %v740 = vadd.f32 %v730, %v738
    %v741 = vtanh.pop %v740
    %743 = vrot.lane.b32.xlu0 %v741, 64
    %v744 = vpop.permute.xlu0 %743
    %v746 = vmul.f32 %v726, %v744
    %748 = vrot.lane.b32.xlu0 %v746, 32
    %v749 = vpop.permute.xlu0 %748
    %v751 = vrot.slane %v642, 2
    %752 = vrot.lane.b32.xlu0 %v751, 64
    %v753 = vpop.permute.xlu0 %752
    %v755 = vsel %vm222, %v749, %v753
    %v757 = vrot.slane %v755, 6
    %v758 = vsel %vm280, %v757, 0
    %760 = vmatpush.msra.mxu0 0.0
    %761 = vmatpush.msra.mxu0 0.0
    %762 = vmatpush.msra.mxu0 0.0
    %763 = vmatpush.msra.mxu0 0.0
    %764 = vmatpush.msra.mxu0 0.0
    %765 = vmatpush.msra.mxu0 0.0
    %766 = vmatpush.msra.mxu0 0.0
    %767 = vmatpush.msra.mxu0 0.0
    %768 = vmatpush.msra.mxu0 %v151
    %769 = vmatpush.msra.mxu0 %v150
    %770 = vmatpush.msra.mxu0 %v149
    %771 = vmatpush.msra.mxu0 %v148
    %772 = vmatpush.msra.mxu0 %v147
    %773 = vmatpush.msra.mxu0 %v146
    %774 = vmatpush.msra.mxu0 %v145
    %775 = vmatpush.msra.mxu0 %v144
    %776 = vmatmul.f32.gmra.mxu0 %v758
    %v777 = vpop.f32.mrf.mxu0
    %v778 = vadd.f32 %v162, %v777
    %779 = vdwg.mxu0
    %v780 = vtanh.pop %v778
    %v781 = vmul.f32 %v780, %v173
    %v782 = vadd.f32 %v781, %v174
    %v783 = vmul.f32 %v782, %v636
    %785 = vrot.lane.b32.xlu0 %v782, 64
    %v786 = vpop.permute.xlu0 %785
    %v788 = vmul.f32 %v782, %v786
    %790 = vrot.lane.b32.xlu0 %v788, 32
    %v791 = vpop.permute.xlu0 %790
    %v793 = vadd.f32 %v783, %v791
    %v794 = vtanh.pop %v793
    %796 = vrot.lane.b32.xlu0 %v794, 64
    %v797 = vpop.permute.xlu0 %796
    %v799 = vmul.f32 %v782, %v797
    %801 = vrot.lane.b32.xlu0 %v799, 32
    %v802 = vpop.permute.xlu0 %801
    %805 = vrot.lane.b32.xlu0 %v694, 64
    %v806 = vpop.permute.xlu0 %805
    %v808 = vsel %vm222, %v802, %v806
    %v810 = vsel %vm280, %v808, 0
    %812 = vmatpush.msra.mxu0 0.0
    %813 = vmatpush.msra.mxu0 0.0
    %814 = vmatpush.msra.mxu0 0.0
    %815 = vmatpush.msra.mxu0 0.0
    %816 = vmatpush.msra.mxu0 0.0
    %817 = vmatpush.msra.mxu0 0.0
    %818 = vmatpush.msra.mxu0 0.0
    %819 = vmatpush.msra.mxu0 0.0
    %820 = vmatpush.msra.mxu0 %v159
    %821 = vmatpush.msra.mxu0 %v158
    %822 = vmatpush.msra.mxu0 %v157
    %823 = vmatpush.msra.mxu0 %v156
    %824 = vmatpush.msra.mxu0 %v155
    %825 = vmatpush.msra.mxu0 %v154
    %826 = vmatpush.msra.mxu0 %v153
    %827 = vmatpush.msra.mxu0 %v152
    %828 = vmatmul.f32.gmra.mxu0 %v810
    %v829 = vpop.f32.mrf.mxu0
    %v830 = vadd.f32 %v166, %v829
    %831 = vdwg.mxu0
    %v832 = vtanh.pop %v830
    %v833 = vmul.f32 %v832, %v173
    %v834 = vadd.f32 %v833, %v174
    %v835 = vmul.f32 %v834, %v688
    %837 = vrot.lane.b32.xlu0 %v834, 64
    %v838 = vpop.permute.xlu0 %837
    %v840 = vmul.f32 %v834, %v838
    %842 = vrot.lane.b32.xlu0 %v840, 32
    %v843 = vpop.permute.xlu0 %842
    %v845 = vadd.f32 %v835, %v843
    %v846 = vtanh.pop %v845
    %848 = vrot.lane.b32.xlu0 %v846, 64
    %v849 = vpop.permute.xlu0 %848
    %v851 = vmul.f32 %v834, %v849
    %v852 = vrot.slane %v746, 6
    %853 = vrot.lane.b32.xlu0 %v852, 32
    %v854 = vpop.permute.xlu0 %853
    %v855 = vsel %vm222, %v854, 0
    %857 = vmatpush.msra.mxu0 0.0
    %858 = vmatpush.msra.mxu0 0.0
    %859 = vmatpush.msra.mxu0 0.0
    %860 = vmatpush.msra.mxu0 0.0
    %861 = vmatpush.msra.mxu0 0.0
    %862 = vmatpush.msra.mxu0 0.0
    %863 = vmatpush.msra.mxu0 0.0
    %864 = vmatpush.msra.mxu0 0.0
    %865 = vmatpush.msra.mxu0 0.0
    %866 = vmatpush.msra.mxu0 0.0
    %867 = vmatpush.msra.mxu0 0.0
    %868 = vmatpush.msra.mxu0 0.0
    %869 = vmatpush.msra.mxu0 %v143
    %870 = vmatpush.msra.mxu0 %v142
    %871 = vmatpush.msra.mxu0 %v141
    %872 = vmatpush.msra.mxu0 %v140
    %873 = vmatmul.f32.gmra.mxu0 %v855
    %v874 = vpop.f32.mrf.mxu0
    %v875 = vadd.f32 0.0, %v874
    %876 = vdwg.mxu0
    %v877 = vadd.f32 %v210, %v875
    %v878 = vtanh.pop %v877
    %v879 = vmul.f32 %v878, %v173
    %v880 = vadd.f32 %v879, %v174
    %v882 = vrot.slane %v740, 6
    %v884 = vmul.f32 %v880, %v882
    %886 = vrot.lane.b32.xlu0 %v880, 64
    %v887 = vpop.permute.xlu0 %886
    %v889 = vmul.f32 %v880, %v887
    %891 = vrot.lane.b32.xlu0 %v889, 32
    %v892 = vpop.permute.xlu0 %891
    %v894 = vadd.f32 %v884, %v892
    %v895 = vtanh.pop %v894
    %897 = vrot.lane.b32.xlu0 %v895, 64
    %v898 = vpop.permute.xlu0 %897
    %v900 = vmul.f32 %v880, %v898
    %902 = vrot.lane.b32.xlu0 %v900, 32
    %v903 = vpop.permute.xlu0 %902
    %905 = vrot.lane.b32.xlu0 %v799, 64
    %v906 = vpop.permute.xlu0 %905
    %v908 = vsel %vm222, %v903, %v906
    %v910 = vsel %vm280, %v908, 0
    %912 = vmatpush.msra.mxu0 0.0
    %913 = vmatpush.msra.mxu0 0.0
    %914 = vmatpush.msra.mxu0 0.0
    %915 = vmatpush.msra.mxu0 0.0
    %916 = vmatpush.msra.mxu0 0.0
    %917 = vmatpush.msra.mxu0 0.0
    %918 = vmatpush.msra.mxu0 0.0
    %919 = vmatpush.msra.mxu0 0.0
    %920 = vmatpush.msra.mxu0 %v151
    %921 = vmatpush.msra.mxu0 %v150
    %922 = vmatpush.msra.mxu0 %v149
    %923 = vmatpush.msra.mxu0 %v148
    %924 = vmatpush.msra.mxu0 %v147
    %925 = vmatpush.msra.mxu0 %v146
    %926 = vmatpush.msra.mxu0 %v145
    %927 = vmatpush.msra.mxu0 %v144
    %928 = vmatmul.f32.gmra.mxu0 %v910
    %v929 = vpop.f32.mrf.mxu0
    %v930 = vadd.f32 %v162, %v929
    %931 = vdwg.mxu0
    %v932 = vtanh.pop %v930
    %v933 = vmul.f32 %v932, %v173
    %v934 = vadd.f32 %v933, %v174
    %v935 = vmul.f32 %v934, %v793
    %937 = vrot.lane.b32.xlu0 %v934, 64
    %v938 = vpop.permute.xlu0 %937
    %v940 = vmul.f32 %v934, %v938
    %942 = vrot.lane.b32.xlu0 %v940, 32
    %v943 = vpop.permute.xlu0 %942
    %v945 = vadd.f32 %v935, %v943
    %v946 = vtanh.pop %v945
    %948 = vrot.lane.b32.xlu0 %v946, 64
    %v949 = vpop.permute.xlu0 %948
    %v951 = vmul.f32 %v934, %v949
    %953 = vrot.lane.b32.xlu0 %v951, 32
    %v954 = vpop.permute.xlu0 %953
    %957 = vrot.lane.b32.xlu0 %v851, 64
    %v958 = vpop.permute.xlu0 %957
    %v960 = vsel %vm222, %v954, %v958
    %v962 = vsel %vm280, %v960, 0
    %964 = vmatpush.msra.mxu0 0.0
    %965 = vmatpush.msra.mxu0 0.0
    %966 = vmatpush.msra.mxu0 0.0
    %967 = vmatpush.msra.mxu0 0.0
    %968 = vmatpush.msra.mxu0 0.0
    %969 = vmatpush.msra.mxu0 0.0
    %970 = vmatpush.msra.mxu0 0.0
    %971 = vmatpush.msra.mxu0 0.0
    %972 = vmatpush.msra.mxu0 %v159
    %973 = vmatpush.msra.mxu0 %v158
    %974 = vmatpush.msra.mxu0 %v157
    %975 = vmatpush.msra.mxu0 %v156
    %976 = vmatpush.msra.mxu0 %v155
    %977 = vmatpush.msra.mxu0 %v154
    %978 = vmatpush.msra.mxu0 %v153
    %979 = vmatpush.msra.mxu0 %v152
    %980 = vmatmul.f32.gmra.mxu0 %v962
    %v981 = vpop.f32.mrf.mxu0
    %v982 = vadd.f32 %v166, %v981
    %983 = vdwg.mxu0
    %v984 = vtanh.pop %v982
    %v985 = vmul.f32 %v984, %v173
    %v986 = vadd.f32 %v985, %v174
    %v987 = vmul.f32 %v986, %v845
    %989 = vrot.lane.b32.xlu0 %v986, 64
    %v990 = vpop.permute.xlu0 %989
    %v992 = vmul.f32 %v986, %v990
    %994 = vrot.lane.b32.xlu0 %v992, 32
    %v995 = vpop.permute.xlu0 %994
    %v997 = vadd.f32 %v987, %v995
    %v998 = vtanh.pop %v997
    %1000 = vrot.lane.b32.xlu0 %v998, 64
    %v1001 = vpop.permute.xlu0 %1000
    %v1003 = vmul.f32 %v986, %v1001
    %v1004 = vsel %vm222, %v903, 0
    %1006 = vmatpush.msra.mxu0 0.0
    %1007 = vmatpush.msra.mxu0 0.0
    %1008 = vmatpush.msra.mxu0 0.0
    %1009 = vmatpush.msra.mxu0 0.0
    %1010 = vmatpush.msra.mxu0 0.0
    %1011 = vmatpush.msra.mxu0 0.0
    %1012 = vmatpush.msra.mxu0 0.0
    %1013 = vmatpush.msra.mxu0 0.0
    %1014 = vmatpush.msra.mxu0 0.0
    %1015 = vmatpush.msra.mxu0 0.0
    %1016 = vmatpush.msra.mxu0 0.0
    %1017 = vmatpush.msra.mxu0 0.0
    %1018 = vmatpush.msra.mxu0 %v143
    %1019 = vmatpush.msra.mxu0 %v142
    %1020 = vmatpush.msra.mxu0 %v141
    %1021 = vmatpush.msra.mxu0 %v140
    %1022 = vmatmul.f32.gmra.mxu0 %v1004
    %v1023 = vpop.f32.mrf.mxu0
    %v1024 = vadd.f32 0.0, %v1023
    %1025 = vdwg.mxu0
    %v1027 = vrot.slane %v1024, 6
    %v1029 = vadd.f32 %v210, %v1027
    %v1030 = vtanh.pop %v1029
    %v1031 = vmul.f32 %v1030, %v173
    %v1032 = vadd.f32 %v1031, %v174
    %v1034 = vrot.slane %v894, 6
    %v1036 = vmul.f32 %v1032, %v1034
    %1038 = vrot.lane.b32.xlu0 %v1032, 64
    %v1039 = vpop.permute.xlu0 %1038
    %v1041 = vmul.f32 %v1032, %v1039
    %1043 = vrot.lane.b32.xlu0 %v1041, 32
    %v1044 = vpop.permute.xlu0 %1043
    %v1046 = vadd.f32 %v1036, %v1044
    %v1047 = vtanh.pop %v1046
    %1049 = vrot.lane.b32.xlu0 %v1047, 64
    %v1050 = vpop.permute.xlu0 %1049
    %v1052 = vmul.f32 %v1032, %v1050
    %1054 = vrot.lane.b32.xlu0 %v1052, 32
    %v1055 = vpop.permute.xlu0 %1054
    %v1057 = vrot.slane %v951, 6
    %1058 = vrot.lane.b32.xlu0 %v1057, 64
    %v1059 = vpop.permute.xlu0 %1058
    %v1061 = vsel %vm222, %v1055, %v1059
    %v1063 = vrot.slane %v1061, 2
    %v1064 = vsel %vm280, %v1063, 0
    %1066 = vmatpush.msra.mxu0 0.0
    %1067 = vmatpush.msra.mxu0 0.0
    %1068 = vmatpush.msra.mxu0 0.0
    %1069 = vmatpush.msra.mxu0 0.0
    %1070 = vmatpush.msra.mxu0 0.0
    %1071 = vmatpush.msra.mxu0 0.0
    %1072 = vmatpush.msra.mxu0 0.0
    %1073 = vmatpush.msra.mxu0 0.0
    %1074 = vmatpush.msra.mxu0 %v151
    %1075 = vmatpush.msra.mxu0 %v150
    %1076 = vmatpush.msra.mxu0 %v149
    %1077 = vmatpush.msra.mxu0 %v148
    %1078 = vmatpush.msra.mxu0 %v147
    %1079 = vmatpush.msra.mxu0 %v146
    %1080 = vmatpush.msra.mxu0 %v145
    %1081 = vmatpush.msra.mxu0 %v144
    %1082 = vmatmul.f32.gmra.mxu0 %v1064
    %v1083 = vpop.f32.mrf.mxu0
    %v1084 = vadd.f32 %v162, %v1083
    %1085 = vdwg.mxu0
    %v1086 = vtanh.pop %v1084
    %v1087 = vmul.f32 %v1086, %v173
    %v1088 = vadd.f32 %v1087, %v174
    %v1089 = vmul.f32 %v1088, %v945
    %1091 = vrot.lane.b32.xlu0 %v1088, 64
    %v1092 = vpop.permute.xlu0 %1091
    %v1094 = vmul.f32 %v1088, %v1092
    %1096 = vrot.lane.b32.xlu0 %v1094, 32
    %v1097 = vpop.permute.xlu0 %1096
    %v1099 = vadd.f32 %v1089, %v1097
    %v1100 = vtanh.pop %v1099
    %1102 = vrot.lane.b32.xlu0 %v1100, 64
    %v1103 = vpop.permute.xlu0 %1102
    %v1105 = vmul.f32 %v1088, %v1103
    %1107 = vrot.lane.b32.xlu0 %v1105, 32
    %v1108 = vpop.permute.xlu0 %1107
    %1111 = vrot.lane.b32.xlu0 %v1003, 64
    %v1112 = vpop.permute.xlu0 %1111
    %v1114 = vsel %vm222, %v1108, %v1112
    %v1116 = vsel %vm280, %v1114, 0
    %1118 = vmatpush.msra.mxu0 0.0
    %1119 = vmatpush.msra.mxu0 0.0
    %1120 = vmatpush.msra.mxu0 0.0
    %1121 = vmatpush.msra.mxu0 0.0
    %1122 = vmatpush.msra.mxu0 0.0
    %1123 = vmatpush.msra.mxu0 0.0
    %1124 = vmatpush.msra.mxu0 0.0
    %1125 = vmatpush.msra.mxu0 0.0
    %1126 = vmatpush.msra.mxu0 %v159
    %1127 = vmatpush.msra.mxu0 %v158
    %1128 = vmatpush.msra.mxu0 %v157
    %1129 = vmatpush.msra.mxu0 %v156
    %1130 = vmatpush.msra.mxu0 %v155
    %1131 = vmatpush.msra.mxu0 %v154
    %1132 = vmatpush.msra.mxu0 %v153
    %1133 = vmatpush.msra.mxu0 %v152
    %1134 = vmatmul.f32.gmra.mxu0 %v1116
    %v1135 = vpop.f32.mrf.mxu0
    %v1136 = vadd.f32 %v166, %v1135
    %1137 = vdwg.mxu0
    %v1138 = vtanh.pop %v1136
    %v1139 = vmul.f32 %v1138, %v173
    %v1140 = vadd.f32 %v1139, %v174
    %v1141 = vmul.f32 %v1140, %v997
    %1143 = vrot.lane.b32.xlu0 %v1140, 64
    %v1144 = vpop.permute.xlu0 %1143
    %v1146 = vmul.f32 %v1140, %v1144
    %1148 = vrot.lane.b32.xlu0 %v1146, 32
    %v1149 = vpop.permute.xlu0 %1148
    %v1151 = vadd.f32 %v1141, %v1149
    %v1152 = vtanh.pop %v1151
    %1154 = vrot.lane.b32.xlu0 %v1152, 64
    %v1155 = vpop.permute.xlu0 %1154
    %v1157 = vmul.f32 %v1140, %v1155
    %v1158 = vrot.slane %v1052, 2
    %1159 = vrot.lane.b32.xlu0 %v1158, 32
    %v1160 = vpop.permute.xlu0 %1159
    %v1161 = vsel %vm222, %v1160, 0
    %1163 = vmatpush.msra.mxu0 0.0
    %1164 = vmatpush.msra.mxu0 0.0
    %1165 = vmatpush.msra.mxu0 0.0
    %1166 = vmatpush.msra.mxu0 0.0
    %1167 = vmatpush.msra.mxu0 0.0
    %1168 = vmatpush.msra.mxu0 0.0
    %1169 = vmatpush.msra.mxu0 0.0
    %1170 = vmatpush.msra.mxu0 0.0
    %1171 = vmatpush.msra.mxu0 0.0
    %1172 = vmatpush.msra.mxu0 0.0
    %1173 = vmatpush.msra.mxu0 0.0
    %1174 = vmatpush.msra.mxu0 0.0
    %1175 = vmatpush.msra.mxu0 %v143
    %1176 = vmatpush.msra.mxu0 %v142
    %1177 = vmatpush.msra.mxu0 %v141
    %1178 = vmatpush.msra.mxu0 %v140
    %1179 = vmatmul.f32.gmra.mxu0 %v1161
    %v1180 = vpop.f32.mrf.mxu0
    %v1181 = vadd.f32 0.0, %v1180
    %1182 = vdwg.mxu0
    %v1184 = vrot.slane %v1181, 4
    %v1186 = vadd.f32 %v210, %v1184
    %v1187 = vtanh.pop %v1186
    %v1188 = vmul.f32 %v1187, %v173
    %v1189 = vadd.f32 %v1188, %v174
    %v1191 = vrot.slane %v1046, 6
    %v1193 = vmul.f32 %v1189, %v1191
    %1195 = vrot.lane.b32.xlu0 %v1189, 64
    %v1196 = vpop.permute.xlu0 %1195
    %v1198 = vmul.f32 %v1189, %v1196
    %1200 = vrot.lane.b32.xlu0 %v1198, 32
    %v1201 = vpop.permute.xlu0 %1200
    %v1203 = vadd.f32 %v1193, %v1201
    %v1204 = vtanh.pop %v1203
    %1206 = vrot.lane.b32.xlu0 %v1204, 64
    %v1207 = vpop.permute.xlu0 %1206
    %v1209 = vmul.f32 %v1189, %v1207
    %1211 = vrot.lane.b32.xlu0 %v1209, 32
    %v1212 = vpop.permute.xlu0 %1211
    %v1214 = vrot.slane %v1105, 4
    %1215 = vrot.lane.b32.xlu0 %v1214, 64
    %v1216 = vpop.permute.xlu0 %1215
    %v1218 = vsel %vm222, %v1212, %v1216
    %v1220 = vrot.slane %v1218, 4
    %v1221 = vsel %vm280, %v1220, 0
    %1223 = vmatpush.msra.mxu0 0.0
    %1224 = vmatpush.msra.mxu0 0.0
    %1225 = vmatpush.msra.mxu0 0.0
    %1226 = vmatpush.msra.mxu0 0.0
    %1227 = vmatpush.msra.mxu0 0.0
    %1228 = vmatpush.msra.mxu0 0.0
    %1229 = vmatpush.msra.mxu0 0.0
    %1230 = vmatpush.msra.mxu0 0.0
    %1231 = vmatpush.msra.mxu0 %v151
    %1232 = vmatpush.msra.mxu0 %v150
    %1233 = vmatpush.msra.mxu0 %v149
    %1234 = vmatpush.msra.mxu0 %v148
    %1235 = vmatpush.msra.mxu0 %v147
    %1236 = vmatpush.msra.mxu0 %v146
    %1237 = vmatpush.msra.mxu0 %v145
    %1238 = vmatpush.msra.mxu0 %v144
    %1239 = vmatmul.f32.gmra.mxu0 %v1221
    %v1240 = vpop.f32.mrf.mxu0
    %v1241 = vadd.f32 %v162, %v1240
    %1242 = vdwg.mxu0
    %v1243 = vtanh.pop %v1241
    %v1244 = vmul.f32 %v1243, %v173
    %v1245 = vadd.f32 %v1244, %v174
    %v1246 = vmul.f32 %v1245, %v1099
    %1248 = vrot.lane.b32.xlu0 %v1245, 64
    %v1249 = vpop.permute.xlu0 %1248
    %v1251 = vmul.f32 %v1245, %v1249
    %1253 = vrot.lane.b32.xlu0 %v1251, 32
    %v1254 = vpop.permute.xlu0 %1253
    %v1256 = vadd.f32 %v1246, %v1254
    %v1257 = vtanh.pop %v1256
    %1259 = vrot.lane.b32.xlu0 %v1257, 64
    %v1260 = vpop.permute.xlu0 %1259
    %v1262 = vmul.f32 %v1245, %v1260
    %1264 = vrot.lane.b32.xlu0 %v1262, 32
    %v1265 = vpop.permute.xlu0 %1264
    %1268 = vrot.lane.b32.xlu0 %v1157, 64
    %v1269 = vpop.permute.xlu0 %1268
    %v1271 = vsel %vm222, %v1265, %v1269
    %v1273 = vsel %vm280, %v1271, 0
    %1275 = vmatpush.msra.mxu0 0.0
    %1276 = vmatpush.msra.mxu0 0.0
    %1277 = vmatpush.msra.mxu0 0.0
    %1278 = vmatpush.msra.mxu0 0.0
    %1279 = vmatpush.msra.mxu0 0.0
    %1280 = vmatpush.msra.mxu0 0.0
    %1281 = vmatpush.msra.mxu0 0.0
    %1282 = vmatpush.msra.mxu0 0.0
    %1283 = vmatpush.msra.mxu0 %v159
    %1284 = vmatpush.msra.mxu0 %v158
    %1285 = vmatpush.msra.mxu0 %v157
    %1286 = vmatpush.msra.mxu0 %v156
    %1287 = vmatpush.msra.mxu0 %v155
    %1288 = vmatpush.msra.mxu0 %v154
    %1289 = vmatpush.msra.mxu0 %v153
    %1290 = vmatpush.msra.mxu0 %v152
    %1291 = vmatmul.f32.gmra.mxu0 %v1273
    %v1292 = vpop.f32.mrf.mxu0
    %v1293 = vadd.f32 %v166, %v1292
    %1294 = vdwg.mxu0
    %v1295 = vtanh.pop %v1293
    %v1296 = vmul.f32 %v1295, %v173
    %v1297 = vadd.f32 %v1296, %v174
    %v1298 = vmul.f32 %v1297, %v1151
    %1300 = vrot.lane.b32.xlu0 %v1297, 64
    %v1301 = vpop.permute.xlu0 %1300
    %v1303 = vmul.f32 %v1297, %v1301
    %1305 = vrot.lane.b32.xlu0 %v1303, 32
    %v1306 = vpop.permute.xlu0 %1305
    %v1308 = vadd.f32 %v1298, %v1306
    %v1309 = vtanh.pop %v1308
    %1311 = vrot.lane.b32.xlu0 %v1309, 64
    %v1312 = vpop.permute.xlu0 %1311
    %v1314 = vmul.f32 %v1297, %v1312
    %v1315 = vrot.slane %v1209, 4
    %1316 = vrot.lane.b32.xlu0 %v1315, 32
    %v1317 = vpop.permute.xlu0 %1316
    %v1318 = vsel %vm222, %v1317, 0
    %1320 = vmatpush.msra.mxu0 0.0
    %1321 = vmatpush.msra.mxu0 0.0
    %1322 = vmatpush.msra.mxu0 0.0
    %1323 = vmatpush.msra.mxu0 0.0
    %1324 = vmatpush.msra.mxu0 0.0
    %1325 = vmatpush.msra.mxu0 0.0
    %1326 = vmatpush.msra.mxu0 0.0
    %1327 = vmatpush.msra.mxu0 0.0
    %1328 = vmatpush.msra.mxu0 0.0
    %1329 = vmatpush.msra.mxu0 0.0
    %1330 = vmatpush.msra.mxu0 0.0
    %1331 = vmatpush.msra.mxu0 0.0
    %1332 = vmatpush.msra.mxu0 %v143
    %1333 = vmatpush.msra.mxu0 %v142
    %1334 = vmatpush.msra.mxu0 %v141
    %1335 = vmatpush.msra.mxu0 %v140
    %1336 = vmatmul.f32.gmra.mxu0 %v1318
    %v1337 = vpop.f32.mrf.mxu0
    %v1338 = vadd.f32 0.0, %v1337
    %1339 = vdwg.mxu0
    %v1341 = vrot.slane %v1338, 2
    %v1343 = vadd.f32 %v210, %v1341
    %v1344 = vtanh.pop %v1343
    %v1345 = vmul.f32 %v1344, %v173
    %v1346 = vadd.f32 %v1345, %v174
    %v1348 = vrot.slane %v1203, 6
    %v1350 = vmul.f32 %v1346, %v1348
    %1352 = vrot.lane.b32.xlu0 %v1346, 64
    %v1353 = vpop.permute.xlu0 %1352
    %v1355 = vmul.f32 %v1346, %v1353
    %1357 = vrot.lane.b32.xlu0 %v1355, 32
    %v1358 = vpop.permute.xlu0 %1357
    %v1360 = vadd.f32 %v1350, %v1358
    %v1361 = vtanh.pop %v1360
    %1363 = vrot.lane.b32.xlu0 %v1361, 64
    %v1364 = vpop.permute.xlu0 %1363
    %v1366 = vmul.f32 %v1346, %v1364
    %1368 = vrot.lane.b32.xlu0 %v1366, 32
    %v1369 = vpop.permute.xlu0 %1368
    %v1371 = vrot.slane %v1262, 2
    %1372 = vrot.lane.b32.xlu0 %v1371, 64
    %v1373 = vpop.permute.xlu0 %1372
    %v1375 = vsel %vm222, %v1369, %v1373
    %v1377 = vrot.slane %v1375, 6
    %v1378 = vsel %vm280, %v1377, 0
    %1380 = vmatpush.msra.mxu0 0.0
    %1381 = vmatpush.msra.mxu0 0.0
    %1382 = vmatpush.msra.mxu0 0.0
    %1383 = vmatpush.msra.mxu0 0.0
    %1384 = vmatpush.msra.mxu0 0.0
    %1385 = vmatpush.msra.mxu0 0.0
    %1386 = vmatpush.msra.mxu0 0.0
    %1387 = vmatpush.msra.mxu0 0.0
    %1388 = vmatpush.msra.mxu0 %v151
    %1389 = vmatpush.msra.mxu0 %v150
    %1390 = vmatpush.msra.mxu0 %v149
    %1391 = vmatpush.msra.mxu0 %v148
    %1392 = vmatpush.msra.mxu0 %v147
    %1393 = vmatpush.msra.mxu0 %v146
    %1394 = vmatpush.msra.mxu0 %v145
    %1395 = vmatpush.msra.mxu0 %v144
    %1396 = vmatmul.f32.gmra.mxu0 %v1378
    %v1397 = vpop.f32.mrf.mxu0
    %v1398 = vadd.f32 %v162, %v1397
    %1399 = vdwg.mxu0
    %v1400 = vtanh.pop %v1398
    %v1401 = vmul.f32 %v1400, %v173
    %v1402 = vadd.f32 %v1401, %v174
    %v1403 = vmul.f32 %v1402, %v1256
    %1405 = vrot.lane.b32.xlu0 %v1402, 64
    %v1406 = vpop.permute.xlu0 %1405
    %v1408 = vmul.f32 %v1402, %v1406
    %1410 = vrot.lane.b32.xlu0 %v1408, 32
    %v1411 = vpop.permute.xlu0 %1410
    %v1413 = vadd.f32 %v1403, %v1411
    %v1414 = vtanh.pop %v1413
    %1416 = vrot.lane.b32.xlu0 %v1414, 64
    %v1417 = vpop.permute.xlu0 %1416
    %v1419 = vmul.f32 %v1402, %v1417
    %1421 = vrot.lane.b32.xlu0 %v1419, 32
    %v1422 = vpop.permute.xlu0 %1421
    %1425 = vrot.lane.b32.xlu0 %v1314, 64
    %v1426 = vpop.permute.xlu0 %1425
    %v1428 = vsel %vm222, %v1422, %v1426
    %v1430 = vsel %vm280, %v1428, 0
    %1432 = vmatpush.msra.mxu0 0.0
    %1433 = vmatpush.msra.mxu0 0.0
    %1434 = vmatpush.msra.mxu0 0.0
    %1435 = vmatpush.msra.mxu0 0.0
    %1436 = vmatpush.msra.mxu0 0.0
    %1437 = vmatpush.msra.mxu0 0.0
    %1438 = vmatpush.msra.mxu0 0.0
    %1439 = vmatpush.msra.mxu0 0.0
    %1440 = vmatpush.msra.mxu0 %v159
    %1441 = vmatpush.msra.mxu0 %v158
    %1442 = vmatpush.msra.mxu0 %v157
    %1443 = vmatpush.msra.mxu0 %v156
    %1444 = vmatpush.msra.mxu0 %v155
    %1445 = vmatpush.msra.mxu0 %v154
    %1446 = vmatpush.msra.mxu0 %v153
    %1447 = vmatpush.msra.mxu0 %v152
    %1448 = vmatmul.f32.gmra.mxu0 %v1430
    %v1449 = vpop.f32.mrf.mxu0
    %v1450 = vadd.f32 %v166, %v1449
    %1451 = vdwg.mxu0
    %v1452 = vtanh.pop %v1450
    %v1453 = vmul.f32 %v1452, %v173
    %v1454 = vadd.f32 %v1453, %v174
    %v1455 = vmul.f32 %v1454, %v1308
    %1457 = vrot.lane.b32.xlu0 %v1454, 64
    %v1458 = vpop.permute.xlu0 %1457
    %v1460 = vmul.f32 %v1454, %v1458
    %1462 = vrot.lane.b32.xlu0 %v1460, 32
    %v1463 = vpop.permute.xlu0 %1462
    %v1465 = vadd.f32 %v1455, %v1463
    %v1466 = vtanh.pop %v1465
    %1468 = vrot.lane.b32.xlu0 %v1466, 64
    %v1469 = vpop.permute.xlu0 %1468
    %v1471 = vmul.f32 %v1454, %v1469
    %v1472 = vrot.slane %v537, 6
    %v1474 = vrot.slane %v694, 4
    %v1476 = vrot.slane %v851, 2
    %v1478 = vrot.slane %v1157, 6
    %v1480 = vrot.slane %v1314, 4
    %v1483 = vrot.slane %v1471, 2
    %vm1485 = vcmask 1041408
    %v1486 = vsel %vm1485, %v383, %v1472
    %vm1487 = vcmask 1043456
    %v1488 = vsel %vm1487, %v1486, %v1474
    %vm1489 = vcmask 1045504
    %v1490 = vsel %vm1489, %v1488, %v1476
    %v1491 = vsel %vm1485, %v1003, %v1478
    %v1492 = vsel %vm1487, %v1491, %v1480
    %v1493 = vsel %vm1489, %v1492, %v1483
    %vm1494 = vcmask 261126
    %1495 = vst.msk [vmem:[#allocation13 - $0x6] sm:$0xc0] %vm1494, %v1369
    %1497 = vrot.lane.b32.xlu0 %v1360, 96
    %v1498 = vpop.permute.xlu0 %1497
    %1500 = vst.msk [vmem:[#allocation14 - $0x6] sm:$0xc0] %vm1494, %v1498
    %s1501 = scalar_lea.vmem [#allocation13], 2
    %vm1502 = vcmask 254976
    %1503 = vst.msk [vmem:[%s1501] sm:$0x3] %vm1502, %v1422
    %1505 = vrot.lane.b32.xlu0 %v1413, 96
    %v1506 = vpop.permute.xlu0 %1505
    %s1508 = scalar_lea.vmem [#allocation14], 2
    %1509 = vst.msk [vmem:[%s1508] sm:$0x3] %vm1502, %v1506
    %1510 = vrot.lane.b32.xlu0 %v1471, 32
    %v1511 = vpop.permute.xlu0 %1510
    %s1513 = scalar_lea.vmem [#allocation13], 4
    %1514 = vst.msk [vmem:[%s1513] sm:$0x3] %vm1502, %v1511
    %1516 = vrot.lane.b32.xlu0 %v1465, 96
    %v1517 = vpop.permute.xlu0 %1516
    %s1519 = scalar_lea.vmem [#allocation14], 4
    %1520 = vst.msk [vmem:[%s1519] sm:$0x3] %vm1502, %v1517
    %v1521 = vld [vmem:[#allocation8] sm:$0xff]
    %v1522 = vld [vmem:[#allocation8 + $0x8] sm:$0xff]
    %v1523 = vld [vmem:[#allocation8 + $0x10] sm:$0xff]
    %v1524 = vld [vmem:[#allocation8 + $0x18] sm:$0xff]
    %v1525 = vld [vmem:[#allocation10] sm:$0x1]
    %v1527 = vperm.slane %v1525, 0
    %1531 = vrot.lane.b32.xlu0 %v1490, 32
    %v1532 = vpop.permute.xlu0 %1531
    %1533 = vrot.lane.b32.xlu0 %v1493, 32
    %v1534 = vpop.permute.xlu0 %1533
    %v1535 = vsel %vm222, %v1532, 0
    %v1537 = vsel %vm222, %v1534, 0
    %1539 = vmatpush.msra.mxu0 0.0
    %1540 = vmatpush.msra.mxu0 0.0
    %1541 = vmatpush.msra.mxu0 0.0
    %1542 = vmatpush.msra.mxu0 0.0
    %1543 = vmatpush.msra.mxu0 0.0
    %1544 = vmatpush.msra.mxu0 0.0
    %1545 = vmatpush.msra.mxu0 0.0
    %1546 = vmatpush.msra.mxu0 0.0
    %1547 = vmatpush.msra.mxu0 0.0
    %1548 = vmatpush.msra.mxu0 0.0
    %1549 = vmatpush.msra.mxu0 0.0
    %1550 = vmatpush.msra.mxu0 0.0
    %1551 = vmatpush.msra.mxu0 %v1524
    %1552 = vmatpush.msra.mxu0 %v1523
    %1553 = vmatpush.msra.mxu0 %v1522
    %1554 = vmatpush.msra.mxu0 %v1521
    %1555 = vmatmul.f32.gmra.mxu0 %v1535
    %v1556 = vpop.f32.mrf.mxu0
    %v1557 = vadd.f32 %v1527, %v1556
    %1558 = vmatmul.f32.gmra.mxu0 %v1537
    %v1559 = vpop.f32.mrf.mxu0
    %v1560 = vadd.f32 %v1527, %v1559
    %1561 = vdwg.mxu0
    %v1562 = vmax.f32 %v1557, 0.0
    %v1563 = vmax.f32 %v1560, 0.0
    %v1564 = vld [vmem:[%s12] sm:$0xff]
    %v1565 = vld [vmem:[%s12 + $0x8] sm:$0xff]
    %v1566 = vld [vmem:[%s12 + $0x10] sm:$0xff]
    %v1567 = vld [vmem:[%s12 + $0x18] sm:$0xff]
    %v1568 = vld [vmem:[#allocation11] sm:$0x1]
    %v1570 = vperm.slane %v1568, 0
    %v1573 = vsel %vm222, %v1562, 0
    %v1576 = vsel %vm222, %v1563, 0
    %1578 = vmatpush.msra.mxu0 0.0
    %1579 = vmatpush.msra.mxu0 0.0
    %1580 = vmatpush.msra.mxu0 0.0
    %1581 = vmatpush.msra.mxu0 0.0
    %1582 = vmatpush.msra.mxu0 0.0
    %1583 = vmatpush.msra.mxu0 0.0
    %1584 = vmatpush.msra.mxu0 0.0
    %1585 = vmatpush.msra.mxu0 0.0
    %1586 = vmatpush.msra.mxu0 0.0
    %1587 = vmatpush.msra.mxu0 0.0
    %1588 = vmatpush.msra.mxu0 0.0
    %1589 = vmatpush.msra.mxu0 0.0
    %1590 = vmatpush.msra.mxu0 %v1567
    %1591 = vmatpush.msra.mxu0 %v1566
    %1592 = vmatpush.msra.mxu0 %v1565
    %1593 = vmatpush.msra.mxu0 %v1564
    %1594 = vmatmul.f32.gmra.mxu0 %v1573
    %v1595 = vpop.f32.mrf.mxu0
    %v1596 = vadd.f32 %v1570, %v1595
    %1597 = vmatmul.f32.gmra.mxu0 %v1576
    %v1598 = vpop.f32.mrf.mxu0
    %v1599 = vadd.f32 %v1570, %v1598
    %1600 = vdwg.mxu0
    %v1601 = vtanh.pop %v1596
    %v1602 = vtanh.pop %v1599
    %vm1603 = vcmask 31744
    %1604 = vst.msk [vmem:[%s14] sm:$0xff] %vm1603, %v1601
    %1605 = vst.msk [vmem:[%s14 + $0x8] sm:$0xff] %vm1603, %v1602
    // Predicated region
    $region82: #{lstm_generator_forward.1} parent=1 // pred_check
      _
    $region83: #{lstm_generator_forward.1} parent=1 // pred_check_branch
      %1607 = sbr.rel (0) target = $region85
    $region84: #{lstm_generator_forward.1} parent=1 // pred_region
      _
    $region85: #{lstm_generator_forward.1} parent=1 // pred_fallthru
      _
    // Predicated region
    $region86: #{lstm_generator_forward.1} parent=1 // pred_check
      _
    $region87: #{lstm_generator_forward.1} parent=1 // pred_check_branch
      %1609 = sbr.rel (0) target = $region89
    $region88: #{lstm_generator_forward.1} parent=1 // pred_region
      %1611 = vsyncadd [#allocation4], 0
      %s1612 = sshll.u32 [#allocation13], 4
      %s1613 = int_to_ptr.vmem [resolvable:$true] %s1612
      %s1614 = sshll.u32 %s15, 4
      %s1615 = int_to_ptr.hbm [resolvable:$true] %s1614
      %1620 = dma.vmem_to_hbm [thread:$0]  %s1613, 96, %s1615, [#allocation4], 32, 32, 2
    $region89: #{lstm_generator_forward.1} parent=1 // pred_fallthru
      _
    // Predicated region
    $region90: #{lstm_generator_forward.1} parent=1 // pred_check
      _
    $region91: #{lstm_generator_forward.1} parent=1 // pred_check_branch
      %1622 = sbr.rel (0) target = $region93
    $region92: #{lstm_generator_forward.1} parent=1 // pred_region
      %1624 = vsyncadd [#allocation15], 0
      %s1625 = sshll.u32 [#allocation14], 4
      %s1626 = int_to_ptr.vmem [resolvable:$true] %s1625
      %s1627 = sshll.u32 %s16, 4
      %s1628 = int_to_ptr.hbm [resolvable:$true] %s1627
      %1633 = dma.vmem_to_hbm [thread:$0]  %s1626, 96, %s1628, [#allocation15], 32, 32, 2
    $region93: #{lstm_generator_forward.1} parent=1 // pred_fallthru
      _
    // Predicated region
    $region94: #{lstm_generator_forward.1} parent=1 // pred_check
      _
    $region95: #{lstm_generator_forward.1} parent=1 // pred_check_branch
      %1635 = sbr.rel (0) target = $region97
    $region96: #{lstm_generator_forward.1} parent=1 // pred_region
      _
    $region97: #{lstm_generator_forward.1} parent=1 // pred_fallthru
      _
    // Predicated region
    $region98: #{lstm_generator_forward.1} parent=1 // pred_check
      _
    $region99: #{lstm_generator_forward.1} parent=1 // pred_check_branch
      %1637 = sbr.rel (0) target = $region101
    $region100: #{lstm_generator_forward.1} parent=1 // pred_region
      %1639 = dma.done [#allocation4], 96
    $region101: #{lstm_generator_forward.1} parent=1 // pred_fallthru
      _
    // Predicated region
    $region102: #{lstm_generator_forward.1} parent=1 // pred_check
      _
    $region103: #{lstm_generator_forward.1} parent=1 // pred_check_branch
      %1641 = sbr.rel (0) target = $region105
    $region104: #{lstm_generator_forward.1} parent=1 // pred_region
      %1643 = dma.done [#allocation15], 96
    $region105: #{lstm_generator_forward.1} parent=1 // pred_fallthru
      _
    %1644 = vsyncpa [#allocation3], 1
    %1645 = vsyncpa [#allocation6], 1
    %1646 = vsyncpa [#allocation9], 1
    %1647 = vsyncpa [#allocation12], 1
    %1648 = vsyncpa [#allocation4], 1
    %1649 = vsyncpa [#allocation15], 1

</llo_original>
